<compile_context>
chip_gen: v5e
topology: v5e:2x2
jax: 0.10.0
libtpu: 0.0.40
codegen_flags: <defaults>
</compile_context>

<pallas_src>
import functools

import jax
import jax.numpy as jnp
import numpy as np
from jax.experimental import pallas as pl
from jax.experimental.pallas import tpu as pltpu

_BT = 8  # batch rows per sublane tile


def _round_up(x, m):
    return (x + m - 1) // m * m


# ----------------------------------------------------------------------------
# Fused kernel: one (batch-tile, layer, time-chunk) grid step per invocation.
# ----------------------------------------------------------------------------
def _block_lstm_kernel(x_ref, w_ih_ref, w_hh_ref, b_ref, y_ref,
                       xproj_ref, h_ref, c_ref, *, chunk, hidden_p):
    C = chunk
    Hp = hidden_p
    rows = C * _BT
    layer = pl.program_id(1)
    t = pl.program_id(2)

    # Fresh (h, c) at the start of every (batch-tile, layer).
    @pl.when(t == 0)
    def _():
        h_ref[...] = jnp.zeros_like(h_ref)
        c_ref[...] = jnp.zeros_like(c_ref)

    row0 = pl.multiple_of(t * rows, rows)
    bias = b_ref[0]                                   # (1, 4Hp) f32

    # Hoisted input projection for the whole chunk: one bf16 MXU matmul + bias.
    # Layer 0 reads the streamed x chunk; deeper layers read the rows the
    # previous layer wrote into the resident output slab.
    @pl.when(layer == 0)
    def _():
        xproj_ref[...] = jnp.dot(
            x_ref[...], w_ih_ref[0],
            preferred_element_type=jnp.float32) + bias

    @pl.when(layer != 0)
    def _():
        inp = y_ref[pl.ds(row0, rows), :].astype(jnp.bfloat16)
        w_ih_h = w_ih_ref[0][:Hp, :]        # rows >= H are zero-padded anyway
        xproj_ref[...] = jnp.dot(
            inp, w_ih_h, preferred_element_type=jnp.float32) + bias

    w_hh = w_hh_ref[0]                                # (Hp, 4Hp) bf16

    # Serial recurrence: only h_prev @ W_hh + elementwise per timestep.
    # TODO(synk): hold W_hh in the MXU across steps (matmul_push_rhs /
    # matmul_acc_lhs) to shave the per-step RHS reload off the serial path.
    def step(s, carry):
        h_prev, c_prev = carry
        r = pl.multiple_of(s * _BT, _BT)
        gates = xproj_ref[pl.ds(r, _BT), :] + jnp.dot(
            h_prev.astype(jnp.bfloat16), w_hh,
            preferred_element_type=jnp.float32)
        i_g = jax.nn.sigmoid(gates[:, 0 * Hp:1 * Hp])
        f_g = jax.nn.sigmoid(gates[:, 1 * Hp:2 * Hp])
        g_g = jnp.tanh(gates[:, 2 * Hp:3 * Hp])
        o_g = jax.nn.sigmoid(gates[:, 3 * Hp:4 * Hp])
        c_new = f_g * c_prev + i_g * g_g
        h_new = o_g * jnp.tanh(c_new)
        y_ref[pl.ds(row0 + r, _BT), :] = h_new        # (8, Hp) aligned tile
        return (h_new, c_new)

    h_fin, c_fin = jax.lax.fori_loop(0, C, step, (h_ref[...], c_ref[...]),
                                     unroll=min(8, C))
    h_ref[...] = h_fin
    c_ref[...] = c_fin


# ----------------------------------------------------------------------------
# Wrapper: padding / packing + pallas_call
# ----------------------------------------------------------------------------
def block_lstm_forward(x, layer_params, *, chunk=128):
    """x: (batch, seq_len, time_steps) f32.
    Returns (seq_len, batch, hidden), matching the PyTorch module's `y`."""
    B, T, I = x.shape
    H = layer_params[0][1].shape[0]
    L = len(layer_params)

    Hp = _round_up(H, 128)               # per-gate block width (lane dim)
    D = _round_up(max(I, H), 128)        # layer-input feature width
    NB = _round_up(B, _BT) // _BT        # batch tiles (megacore-parallel axis)
    Bp = NB * _BT
    C = min(chunk, T)                    # timesteps per chunk
    Tp = _round_up(T, C)
    NT = Tp // C

    # torch.transpose(x, 0, 1) -> (T, B, I); pad, pack batch-tile-major
    # (row within a batch tile = t * 8 + b), cast matmul operand to bf16.
    xt = jnp.transpose(x, (1, 0, 2)).astype(jnp.float32)
    x_pad = jnp.zeros((Tp, Bp, D), jnp.float32).at[:T, :B, :I].set(xt)
    x_pack = (x_pad.reshape(Tp, NB, _BT, D).transpose(1, 0, 2, 3)
              .reshape(NB * Tp * _BT, D).astype(jnp.bfloat16))

    # Pad weights gate-blockwise (each gate owns a full Hp-lane block), stack
    # layers, cast to bf16.  Pad regions stay exactly zero after the cast, so
    # pad lanes of h/c remain 0 through the recurrence.
    w_ih_l, w_hh_l, b_l = [], [], []
    for (w_ih, w_hh, b) in layer_params:
        in_dim = w_ih.shape[0]
        wi = jnp.zeros((D, 4, Hp), jnp.float32).at[:in_dim, :, :H].set(
            w_ih.reshape(in_dim, 4, H))
        wh = jnp.zeros((Hp, 4, Hp), jnp.float32).at[:H, :, :H].set(
            w_hh.reshape(H, 4, H))
        bb = jnp.zeros((1, 4, Hp), jnp.float32).at[:, :, :H].set(
            b.reshape(1, 4, H))
        w_ih_l.append(wi.reshape(D, 4 * Hp))
        w_hh_l.append(wh.reshape(Hp, 4 * Hp))
        b_l.append(bb.reshape(1, 4 * Hp))
    w_ih_s = jnp.stack(w_ih_l).astype(jnp.bfloat16)   # (L, D,  4Hp)
    w_hh_s = jnp.stack(w_hh_l).astype(jnp.bfloat16)   # (L, Hp, 4Hp)
    b_s = jnp.stack(b_l)                              # (L, 1,  4Hp) f32

    # VMEM budget re-derived from shapes (v7x physical VMEM is only 64 MiB;
    # shrink `chunk` / T per call if this estimate approaches that).
    vmem_bytes = (
        Tp * _BT * Hp * 4                 # resident per-batch-tile output slab
        + 2 * C * _BT * D * 2             # x chunk, double-buffered bf16
        + 2 * (D + Hp) * 4 * Hp * 2       # w_ih + w_hh, double-buffered bf16
        + 2 * 8 * 4 * Hp * 4              # bias (sublane-padded)
        + C * _BT * 4 * Hp * 4            # xproj scratch
        + 2 * _BT * Hp * 4)               # h, c scratch
    vmem_limit = int(vmem_bytes * 1.5) + (4 << 20)

    kernel = functools.partial(_block_lstm_kernel, chunk=C, hidden_p=Hp)

    y_pack = pl.pallas_call(
        kernel,
        out_shape=jax.ShapeDtypeStruct((NB * Tp * _BT, Hp), jnp.float32),
        grid_spec=pltpu.PrefetchScalarGridSpec(
            num_scalar_prefetch=0,
            grid=(NB, L, NT),
            in_specs=[
                # x: streamed per (batch tile, time chunk)
                pl.BlockSpec((C * _BT, D), lambda b, l, t: (b * NT + t, 0)),
                # weights / bias: one layer resident, next layer prefetched
                pl.BlockSpec((1, D, 4 * Hp), lambda b, l, t: (l, 0, 0)),
                pl.BlockSpec((1, Hp, 4 * Hp), lambda b, l, t: (l, 0, 0)),
                pl.BlockSpec((1, 1, 4 * Hp), lambda b, l, t: (l, 0, 0)),
            ],
            # Constant block index across (layer, chunk): stays VMEM-resident
            # as the inter-layer activation buffer, written back once per b.
            out_specs=pl.BlockSpec((Tp * _BT, Hp), lambda b, l, t: (b, 0)),
            scratch_shapes=[
                pltpu.VMEM((C * _BT, 4 * Hp), jnp.float32),  # hoisted x@W_ih+b
                pltpu.VMEM((_BT, Hp), jnp.float32),          # h carry
                pltpu.VMEM((_BT, Hp), jnp.float32),          # c carry
            ],
        ),
        compiler_params=pltpu.CompilerParams(
            dimension_semantics=("parallel", "arbitrary", "arbitrary"),
            vmem_limit_bytes=vmem_limit),
    )(x_pack, w_ih_s, w_hh_s, b_s)

    y = (y_pack.reshape(NB, Tp, _BT, Hp).transpose(1, 0, 2, 3)
         .reshape(Tp, Bp, Hp)[:T, :B, :H])
    # TODO(synk): nn.Dropout(p=0.8) applied as identity (eval-mode semantics);
    # training-mode masking would use pltpu.prng_seed / prng_random_bits.
    return y


# ----------------------------------------------------------------------------
# Pure-JAX reference for correctness check
# ----------------------------------------------------------------------------
def _lstm_layer_ref(x_seq, w_ih, w_hh, b):
    H = w_hh.shape[0]
    B = x_seq.shape[1]

    def step(carry, x_t):
        h, c = carry
        gates = x_t @ w_ih + h @ w_hh + b
        i_g = jax.nn.sigmoid(gates[:, 0 * H:1 * H])
        f_g = jax.nn.sigmoid(gates[:, 1 * H:2 * H])
        g_g = jnp.tanh(gates[:, 2 * H:3 * H])
        o_g = jax.nn.sigmoid(gates[:, 3 * H:4 * H])
        c_new = f_g * c + i_g * g_g
        h_new = o_g * jnp.tanh(c_new)
        return (h_new, c_new), h_new

    init = (jnp.zeros((B, H), jnp.float32), jnp.zeros((B, H), jnp.float32))
    _, ys = jax.lax.scan(step, init, x_seq)
    return ys


def block_lstm_ref(x, layer_params):
    h = jnp.transpose(x, (1, 0, 2))
    for (w_ih, w_hh, b) in layer_params:
        h = _lstm_layer_ref(h, w_ih, w_hh, b)
    return h


# ----------------------------------------------------------------------------
# Deterministic parameter init (PyTorch LSTM shapes, U(-1/sqrt(H), 1/sqrt(H)))
# ----------------------------------------------------------------------------
def init_lstm_params(key, time_steps, hidden, num_layers):
    params = []
    bound = 1.0 / np.sqrt(hidden)
    for layer in range(num_layers):
        in_dim = time_steps if layer == 0 else hidden
        key, k1, k2, k3, k4 = jax.random.split(key, 5)
        w_ih = jax.random.uniform(k1, (in_dim, 4 * hidden), jnp.float32,
                                  -bound, bound)
        w_hh = jax.random.uniform(k2, (hidden, 4 * hidden), jnp.float32,
                                  -bound, bound)
        b_ih = jax.random.uniform(k3, (4 * hidden,), jnp.float32, -bound, bound)
        b_hh = jax.random.uniform(k4, (4 * hidden,), jnp.float32, -bound, bound)
        b = (b_ih + b_hh).reshape(1, 4 * hidden)
        params.append((w_ih, w_hh, b))
    return params


if __name__ == "__main__":
    batch, seq_len, time_steps = 2, 8, 16
    hidden, num_layers = 32, 2

    key = jax.random.PRNGKey(0)
    key, kx = jax.random.split(key)
    x = jax.random.normal(kx, (batch, seq_len, time_steps), jnp.float32)

    params = init_lstm_params(key, time_steps, hidden, num_layers)

    y = jax.block_until_ready(block_lstm_forward(x, params))
    y_ref = jax.block_until_ready(block_lstm_ref(x, params))

    assert y.shape == (seq_len, batch, hidden)
    # bf16 matmul operands -> loose-ish tolerance vs all-f32 reference.
    assert np.allclose(np.asarray(y), np.asarray(y_ref), rtol=2e-2, atol=2e-2), (
        float(np.max(np.abs(np.asarray(y) - np.asarray(y_ref)))))

    print("KERNEL_OK")
</pallas_src>

<mosaic_0001>
module attributes {stable_mosaic.version = 11 : i64} {
  func.func @_block_lstm_kernel(%arg0: i32, %arg1: i32, %arg2: i32, %arg3: memref<64x128xbf16, #tpu.memory_space<vmem>>, %arg4: memref<1x128x512xbf16, #tpu.memory_space<vmem>>, %arg5: memref<1x128x512xbf16, #tpu.memory_space<vmem>>, %arg6: memref<1x1x512xf32, #tpu.memory_space<vmem>>, %arg7: memref<64x128xf32, #tpu.memory_space<vmem>>, %arg8: memref<64x512xf32, #tpu.memory_space<vmem>>, %arg9: memref<8x128xf32, #tpu.memory_space<vmem>>, %arg10: memref<8x128xf32, #tpu.memory_space<vmem>>) attributes {dimension_semantics = [#tpu.dimension_semantics<parallel>, #tpu.dimension_semantics<arbitrary>, #tpu.dimension_semantics<arbitrary>], iteration_bounds = array<i64: 1, 2, 1>, scalar_prefetch = 0 : i64, scratch_operands = 3 : i64, tpu.core_type = #tpu.core_type<tc>, window_params = [{transform_indices = @transform_0, window_bounds = array<i64: 64, 128>}, {transform_indices = @transform_1, window_bounds = array<i64: 1, 128, 512>}, {transform_indices = @transform_2, window_bounds = array<i64: 1, 128, 512>}, {transform_indices = @transform_3, window_bounds = array<i64: 1, 1, 512>}, {transform_indices = @transform_4, window_bounds = array<i64: 64, 128>}]} {
    %c0_i32 = arith.constant 0 : i32
    %0 = arith.cmpi eq, %arg2, %c0_i32 : i32
    %1 = arith.extui %0 : i1 to i32
    %c0_i32_0 = arith.constant 0 : i32
    %2 = arith.cmpi ne, %1, %c0_i32_0 : i32
    scf.if %2 {
      %cst_74 = arith.constant 0.000000e+00 : f32
      %299 = vector.broadcast %cst_74 : f32 to vector<8x128xf32>
      %c0_75 = arith.constant 0 : index
      %c0_76 = arith.constant 0 : index
      %300 = vector.load %arg9[%c0_75, %c0_76] : memref<8x128xf32, #tpu.memory_space<vmem>>, vector<8x128xf32>
      tpu.vector_store %arg9[%c0_75, %c0_76], %299 {strides = array<i32>} : memref<8x128xf32, #tpu.memory_space<vmem>>, vector<8x128xf32>,
      %cst_77 = arith.constant 0.000000e+00 : f32
      %301 = vector.broadcast %cst_77 : f32 to vector<8x128xf32>
      %c0_78 = arith.constant 0 : index
      %c0_79 = arith.constant 0 : index
      %302 = vector.load %arg10[%c0_78, %c0_79] : memref<8x128xf32, #tpu.memory_space<vmem>>, vector<8x128xf32>
      tpu.vector_store %arg10[%c0_78, %c0_79], %301 {strides = array<i32>} : memref<8x128xf32, #tpu.memory_space<vmem>>, vector<8x128xf32>,
    } else {
    }
    %c64_i32 = arith.constant 64 : i32
    %3 = arith.muli %arg2, %c64_i32 : i32
    %4 = tpu.assume_multiple %3, 64 : i32
    %c0 = arith.constant 0 : index
    %c0_1 = arith.constant 0 : index
    %c0_2 = arith.constant 0 : index
    %5 = vector.load %arg6[%c0, %c0_1, %c0_2] : memref<1x1x512xf32, #tpu.memory_space<vmem>>, vector<1x1x512xf32>
    %6 = vector.shape_cast %5 : vector<1x1x512xf32> to vector<1x512xf32>
    %c0_i32_3 = arith.constant 0 : i32
    %7 = arith.cmpi eq, %arg1, %c0_i32_3 : i32
    %8 = arith.extui %7 : i1 to i32
    %c0_i32_4 = arith.constant 0 : i32
    %9 = arith.cmpi ne, %8, %c0_i32_4 : i32
    scf.if %9 {
      %c0_74 = arith.constant 0 : index
      %c0_75 = arith.constant 0 : index
      %299 = vector.load %arg3[%c0_74, %c0_75] : memref<64x128xbf16, #tpu.memory_space<vmem>>, vector<64x128xbf16>
      %c0_76 = arith.constant 0 : index
      %c0_77 = arith.constant 0 : index
      %c0_78 = arith.constant 0 : index
      %300 = vector.load %arg4[%c0_76, %c0_77, %c0_78] : memref<1x128x512xbf16, #tpu.memory_space<vmem>>, vector<1x128x512xbf16>
      %301 = vector.shape_cast %300 : vector<1x128x512xbf16> to vector<128x512xbf16>
      %cst_79 = arith.constant dense<0.000000e+00> : vector<64x512xf32>
      %302 = tpu.matmul %299, %301, %cst_79 {dimension_numbers = #tpu.dot_dimension_numbers<[1], [0], [0], [1], [0, 0, 1, 1], [], []>} : vector<64x128xbf16>, vector<128x512xbf16>, vector<64x512xf32> -> vector<64x512xf32>
      %303 = vector.broadcast %6 : vector<1x512xf32> to vector<64x512xf32>
      %304 = arith.addf %302, %303 : vector<64x512xf32>
      %c0_80 = arith.constant 0 : index
      %c0_81 = arith.constant 0 : index
      %305 = vector.load %arg8[%c0_80, %c0_81] : memref<64x512xf32, #tpu.memory_space<vmem>>, vector<64x512xf32>
      tpu.vector_store %arg8[%c0_80, %c0_81], %304 {strides = array<i32>} : memref<64x512xf32, #tpu.memory_space<vmem>>, vector<64x512xf32>,
    } else {
    }
    %c0_i32_5 = arith.constant 0 : i32
    %10 = arith.cmpi ne, %arg1, %c0_i32_5 : i32
    %11 = arith.extui %10 : i1 to i32
    %c0_i32_6 = arith.constant 0 : i32
    %12 = arith.cmpi ne, %11, %c0_i32_6 : i32
    scf.if %12 {
      %299 = arith.index_cast %4 : i32 to index
      %c0_74 = arith.constant 0 : index
      %300 = vector.load %arg7[%299, %c0_74] : memref<64x128xf32, #tpu.memory_space<vmem>>, vector<64x128xf32>
      %301 = arith.truncf %300 : vector<64x128xf32> to vector<64x128xbf16>
      %c0_75 = arith.constant 0 : index
      %c0_76 = arith.constant 0 : index
      %c0_77 = arith.constant 0 : index
      %302 = vector.load %arg4[%c0_75, %c0_76, %c0_77] : memref<1x128x512xbf16, #tpu.memory_space<vmem>>, vector<1x128x512xbf16>
      %303 = vector.shape_cast %302 : vector<1x128x512xbf16> to vector<128x512xbf16>
      %cst_78 = arith.constant dense<0.000000e+00> : vector<64x512xf32>
      %304 = tpu.matmul %301, %303, %cst_78 {dimension_numbers = #tpu.dot_dimension_numbers<[1], [0], [0], [1], [0, 0, 1, 1], [], []>} : vector<64x128xbf16>, vector<128x512xbf16>, vector<64x512xf32> -> vector<64x512xf32>
      %305 = vector.broadcast %6 : vector<1x512xf32> to vector<64x512xf32>
      %306 = arith.addf %304, %305 : vector<64x512xf32>
      %c0_79 = arith.constant 0 : index
      %c0_80 = arith.constant 0 : index
      %307 = vector.load %arg8[%c0_79, %c0_80] : memref<64x512xf32, #tpu.memory_space<vmem>>, vector<64x512xf32>
      tpu.vector_store %arg8[%c0_79, %c0_80], %306 {strides = array<i32>} : memref<64x512xf32, #tpu.memory_space<vmem>>, vector<64x512xf32>,
    } else {
    }
    %c0_7 = arith.constant 0 : index
    %c0_8 = arith.constant 0 : index
    %c0_9 = arith.constant 0 : index
    %13 = vector.load %arg5[%c0_7, %c0_8, %c0_9] : memref<1x128x512xbf16, #tpu.memory_space<vmem>>, vector<1x128x512xbf16>
    %14 = vector.shape_cast %13 : vector<1x128x512xbf16> to vector<128x512xbf16>
    %c0_10 = arith.constant 0 : index
    %c0_11 = arith.constant 0 : index
    %15 = vector.load %arg9[%c0_10, %c0_11] : memref<8x128xf32, #tpu.memory_space<vmem>>, vector<8x128xf32>
    %c0_12 = arith.constant 0 : index
    %c0_13 = arith.constant 0 : index
    %16 = vector.load %arg10[%c0_12, %c0_13] : memref<8x128xf32, #tpu.memory_space<vmem>>, vector<8x128xf32>
    %c0_i32_14 = arith.constant 0 : i32
    %c8_i32 = arith.constant 8 : i32
    %17 = arith.muli %c0_i32_14, %c8_i32 : i32
    %18 = tpu.assume_multiple %17, 8 : i32
    %19 = arith.index_cast %18 : i32 to index
    %c0_15 = arith.constant 0 : index
    %20 = vector.load %arg8[%19, %c0_15] : memref<64x512xf32, #tpu.memory_space<vmem>>, vector<8x512xf32>
    %21 = arith.truncf %15 : vector<8x128xf32> to vector<8x128xbf16>
    %cst = arith.constant dense<0.000000e+00> : vector<8x512xf32>
    %22 = tpu.matmul %21, %14, %cst {dimension_numbers = #tpu.dot_dimension_numbers<[1], [0], [0], [1], [0, 0, 1, 1], [], []>} : vector<8x128xbf16>, vector<128x512xbf16>, vector<8x512xf32> -> vector<8x512xf32>
    %23 = arith.addf %20, %22 : vector<8x512xf32>
    %24 = vector.extract_strided_slice %23 {offsets = [0, 0], sizes = [8, 128], strides = [1, 1]} : vector<8x512xf32> to vector<8x128xf32>
    %25 = arith.negf %24 : vector<8x128xf32>
    %26 = math.exp %25 : vector<8x128xf32>
    %cst_16 = arith.constant 1.000000e+00 : f32
    %27 = vector.broadcast %cst_16 : f32 to vector<8x128xf32>
    %28 = arith.addf %27, %26 : vector<8x128xf32>
    %29 = arith.divf %27, %28 : vector<8x128xf32>
    %30 = vector.extract_strided_slice %23 {offsets = [0, 128], sizes = [8, 128], strides = [1, 1]} : vector<8x512xf32> to vector<8x128xf32>
    %31 = arith.negf %30 : vector<8x128xf32>
    %32 = math.exp %31 : vector<8x128xf32>
    %cst_17 = arith.constant 1.000000e+00 : f32
    %33 = vector.broadcast %cst_17 : f32 to vector<8x128xf32>
    %34 = arith.addf %33, %32 : vector<8x128xf32>
    %35 = arith.divf %33, %34 : vector<8x128xf32>
    %36 = vector.extract_strided_slice %23 {offsets = [0, 256], sizes = [8, 128], strides = [1, 1]} : vector<8x512xf32> to vector<8x128xf32>
    %37 = math.tanh %36 : vector<8x128xf32>
    %38 = vector.extract_strided_slice %23 {offsets = [0, 384], sizes = [8, 128], strides = [1, 1]} : vector<8x512xf32> to vector<8x128xf32>
    %39 = arith.negf %38 : vector<8x128xf32>
    %40 = math.exp %39 : vector<8x128xf32>
    %cst_18 = arith.constant 1.000000e+00 : f32
    %41 = vector.broadcast %cst_18 : f32 to vector<8x128xf32>
    %42 = arith.addf %41, %40 : vector<8x128xf32>
    %43 = arith.divf %41, %42 : vector<8x128xf32>
    %44 = arith.mulf %35, %16 : vector<8x128xf32>
    %45 = arith.mulf %29, %37 : vector<8x128xf32>
    %46 = arith.addf %44, %45 : vector<8x128xf32>
    %47 = math.tanh %46 : vector<8x128xf32>
    %48 = arith.mulf %43, %47 : vector<8x128xf32>
    %49 = arith.addi %4, %18 : i32
    %50 = arith.index_cast %49 : i32 to index
    %c0_19 = arith.constant 0 : index
    %51 = vector.load %arg7[%50, %c0_19] : memref<64x128xf32, #tpu.memory_space<vmem>>, vector<8x128xf32>
    tpu.vector_store %arg7[%50, %c0_19], %48 {strides = array<i32>} : memref<64x128xf32, #tpu.memory_space<vmem>>, vector<8x128xf32>,
    %c1_i32 = arith.constant 1 : i32
    %c8_i32_20 = arith.constant 8 : i32
    %52 = arith.muli %c1_i32, %c8_i32_20 : i32
    %53 = tpu.assume_multiple %52, 8 : i32
    %54 = arith.index_cast %53 : i32 to index
    %c0_21 = arith.constant 0 : index
    %55 = vector.load %arg8[%54, %c0_21] : memref<64x512xf32, #tpu.memory_space<vmem>>, vector<8x512xf32>
    %56 = arith.truncf %48 : vector<8x128xf32> to vector<8x128xbf16>
    %cst_22 = arith.constant dense<0.000000e+00> : vector<8x512xf32>
    %57 = tpu.matmul %56, %14, %cst_22 {dimension_numbers = #tpu.dot_dimension_numbers<[1], [0], [0], [1], [0, 0, 1, 1], [], []>} : vector<8x128xbf16>, vector<128x512xbf16>, vector<8x512xf32> -> vector<8x512xf32>
    %58 = arith.addf %55, %57 : vector<8x512xf32>
    %59 = vector.extract_strided_slice %58 {offsets = [0, 0], sizes = [8, 128], strides = [1, 1]} : vector<8x512xf32> to vector<8x128xf32>
    %60 = arith.negf %59 : vector<8x128xf32>
    %61 = math.exp %60 : vector<8x128xf32>
    %cst_23 = arith.constant 1.000000e+00 : f32
    %62 = vector.broadcast %cst_23 : f32 to vector<8x128xf32>
    %63 = arith.addf %62, %61 : vector<8x128xf32>
    %64 = arith.divf %62, %63 : vector<8x128xf32>
    %65 = vector.extract_strided_slice %58 {offsets = [0, 128], sizes = [8, 128], strides = [1, 1]} : vector<8x512xf32> to vector<8x128xf32>
    %66 = arith.negf %65 : vector<8x128xf32>
    %67 = math.exp %66 : vector<8x128xf32>
    %cst_24 = arith.constant 1.000000e+00 : f32
    %68 = vector.broadcast %cst_24 : f32 to vector<8x128xf32>
    %69 = arith.addf %68, %67 : vector<8x128xf32>
    %70 = arith.divf %68, %69 : vector<8x128xf32>
    %71 = vector.extract_strided_slice %58 {offsets = [0, 256], sizes = [8, 128], strides = [1, 1]} : vector<8x512xf32> to vector<8x128xf32>
    %72 = math.tanh %71 : vector<8x128xf32>
    %73 = vector.extract_strided_slice %58 {offsets = [0, 384], sizes = [8, 128], strides = [1, 1]} : vector<8x512xf32> to vector<8x128xf32>
    %74 = arith.negf %73 : vector<8x128xf32>
    %75 = math.exp %74 : vector<8x128xf32>
    %cst_25 = arith.constant 1.000000e+00 : f32
    %76 = vector.broadcast %cst_25 : f32 to vector<8x128xf32>
    %77 = arith.addf %76, %75 : vector<8x128xf32>
    %78 = arith.divf %76, %77 : vector<8x128xf32>
    %79 = arith.mulf %70, %46 : vector<8x128xf32>
    %80 = arith.mulf %64, %72 : vector<8x128xf32>
    %81 = arith.addf %79, %80 : vector<8x128xf32>
    %82 = math.tanh %81 : vector<8x128xf32>
    %83 = arith.mulf %78, %82 : vector<8x128xf32>
    %84 = arith.addi %4, %53 : i32
    %85 = arith.index_cast %84 : i32 to index
    %c0_26 = arith.constant 0 : index
    %86 = vector.load %arg7[%85, %c0_26] : memref<64x128xf32, #tpu.memory_space<vmem>>, vector<8x128xf32>
    tpu.vector_store %arg7[%85, %c0_26], %83 {strides = array<i32>} : memref<64x128xf32, #tpu.memory_space<vmem>>, vector<8x128xf32>,
    %c2_i32 = arith.constant 2 : i32
    %c8_i32_27 = arith.constant 8 : i32
    %87 = arith.muli %c2_i32, %c8_i32_27 : i32
    %88 = tpu.assume_multiple %87, 8 : i32
    %89 = arith.index_cast %88 : i32 to index
    %c0_28 = arith.constant 0 : index
    %90 = vector.load %arg8[%89, %c0_28] : memref<64x512xf32, #tpu.memory_space<vmem>>, vector<8x512xf32>
    %91 = arith.truncf %83 : vector<8x128xf32> to vector<8x128xbf16>
    %cst_29 = arith.constant dense<0.000000e+00> : vector<8x512xf32>
    %92 = tpu.matmul %91, %14, %cst_29 {dimension_numbers = #tpu.dot_dimension_numbers<[1], [0], [0], [1], [0, 0, 1, 1], [], []>} : vector<8x128xbf16>, vector<128x512xbf16>, vector<8x512xf32> -> vector<8x512xf32>
    %93 = arith.addf %90, %92 : vector<8x512xf32>
    %94 = vector.extract_strided_slice %93 {offsets = [0, 0], sizes = [8, 128], strides = [1, 1]} : vector<8x512xf32> to vector<8x128xf32>
    %95 = arith.negf %94 : vector<8x128xf32>
    %96 = math.exp %95 : vector<8x128xf32>
    %cst_30 = arith.constant 1.000000e+00 : f32
    %97 = vector.broadcast %cst_30 : f32 to vector<8x128xf32>
    %98 = arith.addf %97, %96 : vector<8x128xf32>
    %99 = arith.divf %97, %98 : vector<8x128xf32>
    %100 = vector.extract_strided_slice %93 {offsets = [0, 128], sizes = [8, 128], strides = [1, 1]} : vector<8x512xf32> to vector<8x128xf32>
    %101 = arith.negf %100 : vector<8x128xf32>
    %102 = math.exp %101 : vector<8x128xf32>
    %cst_31 = arith.constant 1.000000e+00 : f32
    %103 = vector.broadcast %cst_31 : f32 to vector<8x128xf32>
    %104 = arith.addf %103, %102 : vector<8x128xf32>
    %105 = arith.divf %103, %104 : vector<8x128xf32>
    %106 = vector.extract_strided_slice %93 {offsets = [0, 256], sizes = [8, 128], strides = [1, 1]} : vector<8x512xf32> to vector<8x128xf32>
    %107 = math.tanh %106 : vector<8x128xf32>
    %108 = vector.extract_strided_slice %93 {offsets = [0, 384], sizes = [8, 128], strides = [1, 1]} : vector<8x512xf32> to vector<8x128xf32>
    %109 = arith.negf %108 : vector<8x128xf32>
    %110 = math.exp %109 : vector<8x128xf32>
    %cst_32 = arith.constant 1.000000e+00 : f32
    %111 = vector.broadcast %cst_32 : f32 to vector<8x128xf32>
    %112 = arith.addf %111, %110 : vector<8x128xf32>
    %113 = arith.divf %111, %112 : vector<8x128xf32>
    %114 = arith.mulf %105, %81 : vector<8x128xf32>
    %115 = arith.mulf %99, %107 : vector<8x128xf32>
    %116 = arith.addf %114, %115 : vector<8x128xf32>
    %117 = math.tanh %116 : vector<8x128xf32>
    %118 = arith.mulf %113, %117 : vector<8x128xf32>
    %119 = arith.addi %4, %88 : i32
    %120 = arith.index_cast %119 : i32 to index
    %c0_33 = arith.constant 0 : index
    %121 = vector.load %arg7[%120, %c0_33] : memref<64x128xf32, #tpu.memory_space<vmem>>, vector<8x128xf32>
    tpu.vector_store %arg7[%120, %c0_33], %118 {strides = array<i32>} : memref<64x128xf32, #tpu.memory_space<vmem>>, vector<8x128xf32>,
    %c3_i32 = arith.constant 3 : i32
    %c8_i32_34 = arith.constant 8 : i32
    %122 = arith.muli %c3_i32, %c8_i32_34 : i32
    %123 = tpu.assume_multiple %122, 8 : i32
    %124 = arith.index_cast %123 : i32 to index
    %c0_35 = arith.constant 0 : index
    %125 = vector.load %arg8[%124, %c0_35] : memref<64x512xf32, #tpu.memory_space<vmem>>, vector<8x512xf32>
    %126 = arith.truncf %118 : vector<8x128xf32> to vector<8x128xbf16>
    %cst_36 = arith.constant dense<0.000000e+00> : vector<8x512xf32>
    %127 = tpu.matmul %126, %14, %cst_36 {dimension_numbers = #tpu.dot_dimension_numbers<[1], [0], [0], [1], [0, 0, 1, 1], [], []>} : vector<8x128xbf16>, vector<128x512xbf16>, vector<8x512xf32> -> vector<8x512xf32>
    %128 = arith.addf %125, %127 : vector<8x512xf32>
    %129 = vector.extract_strided_slice %128 {offsets = [0, 0], sizes = [8, 128], strides = [1, 1]} : vector<8x512xf32> to vector<8x128xf32>
    %130 = arith.negf %129 : vector<8x128xf32>
    %131 = math.exp %130 : vector<8x128xf32>
    %cst_37 = arith.constant 1.000000e+00 : f32
    %132 = vector.broadcast %cst_37 : f32 to vector<8x128xf32>
    %133 = arith.addf %132, %131 : vector<8x128xf32>
    %134 = arith.divf %132, %133 : vector<8x128xf32>
    %135 = vector.extract_strided_slice %128 {offsets = [0, 128], sizes = [8, 128], strides = [1, 1]} : vector<8x512xf32> to vector<8x128xf32>
    %136 = arith.negf %135 : vector<8x128xf32>
    %137 = math.exp %136 : vector<8x128xf32>
    %cst_38 = arith.constant 1.000000e+00 : f32
    %138 = vector.broadcast %cst_38 : f32 to vector<8x128xf32>
    %139 = arith.addf %138, %137 : vector<8x128xf32>
    %140 = arith.divf %138, %139 : vector<8x128xf32>
    %141 = vector.extract_strided_slice %128 {offsets = [0, 256], sizes = [8, 128], strides = [1, 1]} : vector<8x512xf32> to vector<8x128xf32>
    %142 = math.tanh %141 : vector<8x128xf32>
    %143 = vector.extract_strided_slice %128 {offsets = [0, 384], sizes = [8, 128], strides = [1, 1]} : vector<8x512xf32> to vector<8x128xf32>
    %144 = arith.negf %143 : vector<8x128xf32>
    %145 = math.exp %144 : vector<8x128xf32>
    %cst_39 = arith.constant 1.000000e+00 : f32
    %146 = vector.broadcast %cst_39 : f32 to vector<8x128xf32>
    %147 = arith.addf %146, %145 : vector<8x128xf32>
    %148 = arith.divf %146, %147 : vector<8x128xf32>
    %149 = arith.mulf %140, %116 : vector<8x128xf32>
    %150 = arith.mulf %134, %142 : vector<8x128xf32>
    %151 = arith.addf %149, %150 : vector<8x128xf32>
    %152 = math.tanh %151 : vector<8x128xf32>
    %153 = arith.mulf %148, %152 : vector<8x128xf32>
    %154 = arith.addi %4, %123 : i32
    %155 = arith.index_cast %154 : i32 to index
    %c0_40 = arith.constant 0 : index
    %156 = vector.load %arg7[%155, %c0_40] : memref<64x128xf32, #tpu.memory_space<vmem>>, vector<8x128xf32>
    tpu.vector_store %arg7[%155, %c0_40], %153 {strides = array<i32>} : memref<64x128xf32, #tpu.memory_space<vmem>>, vector<8x128xf32>,
    %c4_i32 = arith.constant 4 : i32
    %c8_i32_41 = arith.constant 8 : i32
    %157 = arith.muli %c4_i32, %c8_i32_41 : i32
    %158 = tpu.assume_multiple %157, 8 : i32
    %159 = arith.index_cast %158 : i32 to index
    %c0_42 = arith.constant 0 : index
    %160 = vector.load %arg8[%159, %c0_42] : memref<64x512xf32, #tpu.memory_space<vmem>>, vector<8x512xf32>
    %161 = arith.truncf %153 : vector<8x128xf32> to vector<8x128xbf16>
    %cst_43 = arith.constant dense<0.000000e+00> : vector<8x512xf32>
    %162 = tpu.matmul %161, %14, %cst_43 {dimension_numbers = #tpu.dot_dimension_numbers<[1], [0], [0], [1], [0, 0, 1, 1], [], []>} : vector<8x128xbf16>, vector<128x512xbf16>, vector<8x512xf32> -> vector<8x512xf32>
    %163 = arith.addf %160, %162 : vector<8x512xf32>
    %164 = vector.extract_strided_slice %163 {offsets = [0, 0], sizes = [8, 128], strides = [1, 1]} : vector<8x512xf32> to vector<8x128xf32>
    %165 = arith.negf %164 : vector<8x128xf32>
    %166 = math.exp %165 : vector<8x128xf32>
    %cst_44 = arith.constant 1.000000e+00 : f32
    %167 = vector.broadcast %cst_44 : f32 to vector<8x128xf32>
    %168 = arith.addf %167, %166 : vector<8x128xf32>
    %169 = arith.divf %167, %168 : vector<8x128xf32>
    %170 = vector.extract_strided_slice %163 {offsets = [0, 128], sizes = [8, 128], strides = [1, 1]} : vector<8x512xf32> to vector<8x128xf32>
    %171 = arith.negf %170 : vector<8x128xf32>
    %172 = math.exp %171 : vector<8x128xf32>
    %cst_45 = arith.constant 1.000000e+00 : f32
    %173 = vector.broadcast %cst_45 : f32 to vector<8x128xf32>
    %174 = arith.addf %173, %172 : vector<8x128xf32>
    %175 = arith.divf %173, %174 : vector<8x128xf32>
    %176 = vector.extract_strided_slice %163 {offsets = [0, 256], sizes = [8, 128], strides = [1, 1]} : vector<8x512xf32> to vector<8x128xf32>
    %177 = math.tanh %176 : vector<8x128xf32>
    %178 = vector.extract_strided_slice %163 {offsets = [0, 384], sizes = [8, 128], strides = [1, 1]} : vector<8x512xf32> to vector<8x128xf32>
    %179 = arith.negf %178 : vector<8x128xf32>
    %180 = math.exp %179 : vector<8x128xf32>
    %cst_46 = arith.constant 1.000000e+00 : f32
    %181 = vector.broadcast %cst_46 : f32 to vector<8x128xf32>
    %182 = arith.addf %181, %180 : vector<8x128xf32>
    %183 = arith.divf %181, %182 : vector<8x128xf32>
    %184 = arith.mulf %175, %151 : vector<8x128xf32>
    %185 = arith.mulf %169, %177 : vector<8x128xf32>
    %186 = arith.addf %184, %185 : vector<8x128xf32>
    %187 = math.tanh %186 : vector<8x128xf32>
    %188 = arith.mulf %183, %187 : vector<8x128xf32>
    %189 = arith.addi %4, %158 : i32
    %190 = arith.index_cast %189 : i32 to index
    %c0_47 = arith.constant 0 : index
    %191 = vector.load %arg7[%190, %c0_47] : memref<64x128xf32, #tpu.memory_space<vmem>>, vector<8x128xf32>
    tpu.vector_store %arg7[%190, %c0_47], %188 {strides = array<i32>} : memref<64x128xf32, #tpu.memory_space<vmem>>, vector<8x128xf32>,
    %c5_i32 = arith.constant 5 : i32
    %c8_i32_48 = arith.constant 8 : i32
    %192 = arith.muli %c5_i32, %c8_i32_48 : i32
    %193 = tpu.assume_multiple %192, 8 : i32
    %194 = arith.index_cast %193 : i32 to index
    %c0_49 = arith.constant 0 : index
    %195 = vector.load %arg8[%194, %c0_49] : memref<64x512xf32, #tpu.memory_space<vmem>>, vector<8x512xf32>
    %196 = arith.truncf %188 : vector<8x128xf32> to vector<8x128xbf16>
    %cst_50 = arith.constant dense<0.000000e+00> : vector<8x512xf32>
    %197 = tpu.matmul %196, %14, %cst_50 {dimension_numbers = #tpu.dot_dimension_numbers<[1], [0], [0], [1], [0, 0, 1, 1], [], []>} : vector<8x128xbf16>, vector<128x512xbf16>, vector<8x512xf32> -> vector<8x512xf32>
    %198 = arith.addf %195, %197 : vector<8x512xf32>
    %199 = vector.extract_strided_slice %198 {offsets = [0, 0], sizes = [8, 128], strides = [1, 1]} : vector<8x512xf32> to vector<8x128xf32>
    %200 = arith.negf %199 : vector<8x128xf32>
    %201 = math.exp %200 : vector<8x128xf32>
    %cst_51 = arith.constant 1.000000e+00 : f32
    %202 = vector.broadcast %cst_51 : f32 to vector<8x128xf32>
    %203 = arith.addf %202, %201 : vector<8x128xf32>
    %204 = arith.divf %202, %203 : vector<8x128xf32>
    %205 = vector.extract_strided_slice %198 {offsets = [0, 128], sizes = [8, 128], strides = [1, 1]} : vector<8x512xf32> to vector<8x128xf32>
    %206 = arith.negf %205 : vector<8x128xf32>
    %207 = math.exp %206 : vector<8x128xf32>
    %cst_52 = arith.constant 1.000000e+00 : f32
    %208 = vector.broadcast %cst_52 : f32 to vector<8x128xf32>
    %209 = arith.addf %208, %207 : vector<8x128xf32>
    %210 = arith.divf %208, %209 : vector<8x128xf32>
    %211 = vector.extract_strided_slice %198 {offsets = [0, 256], sizes = [8, 128], strides = [1, 1]} : vector<8x512xf32> to vector<8x128xf32>
    %212 = math.tanh %211 : vector<8x128xf32>
    %213 = vector.extract_strided_slice %198 {offsets = [0, 384], sizes = [8, 128], strides = [1, 1]} : vector<8x512xf32> to vector<8x128xf32>
    %214 = arith.negf %213 : vector<8x128xf32>
    %215 = math.exp %214 : vector<8x128xf32>
    %cst_53 = arith.constant 1.000000e+00 : f32
    %216 = vector.broadcast %cst_53 : f32 to vector<8x128xf32>
    %217 = arith.addf %216, %215 : vector<8x128xf32>
    %218 = arith.divf %216, %217 : vector<8x128xf32>
    %219 = arith.mulf %210, %186 : vector<8x128xf32>
    %220 = arith.mulf %204, %212 : vector<8x128xf32>
    %221 = arith.addf %219, %220 : vector<8x128xf32>
    %222 = math.tanh %221 : vector<8x128xf32>
    %223 = arith.mulf %218, %222 : vector<8x128xf32>
    %224 = arith.addi %4, %193 : i32
    %225 = arith.index_cast %224 : i32 to index
    %c0_54 = arith.constant 0 : index
    %226 = vector.load %arg7[%225, %c0_54] : memref<64x128xf32, #tpu.memory_space<vmem>>, vector<8x128xf32>
    tpu.vector_store %arg7[%225, %c0_54], %223 {strides = array<i32>} : memref<64x128xf32, #tpu.memory_space<vmem>>, vector<8x128xf32>,
    %c6_i32 = arith.constant 6 : i32
    %c8_i32_55 = arith.constant 8 : i32
    %227 = arith.muli %c6_i32, %c8_i32_55 : i32
    %228 = tpu.assume_multiple %227, 8 : i32
    %229 = arith.index_cast %228 : i32 to index
    %c0_56 = arith.constant 0 : index
    %230 = vector.load %arg8[%229, %c0_56] : memref<64x512xf32, #tpu.memory_space<vmem>>, vector<8x512xf32>
    %231 = arith.truncf %223 : vector<8x128xf32> to vector<8x128xbf16>
    %cst_57 = arith.constant dense<0.000000e+00> : vector<8x512xf32>
    %232 = tpu.matmul %231, %14, %cst_57 {dimension_numbers = #tpu.dot_dimension_numbers<[1], [0], [0], [1], [0, 0, 1, 1], [], []>} : vector<8x128xbf16>, vector<128x512xbf16>, vector<8x512xf32> -> vector<8x512xf32>
    %233 = arith.addf %230, %232 : vector<8x512xf32>
    %234 = vector.extract_strided_slice %233 {offsets = [0, 0], sizes = [8, 128], strides = [1, 1]} : vector<8x512xf32> to vector<8x128xf32>
    %235 = arith.negf %234 : vector<8x128xf32>
    %236 = math.exp %235 : vector<8x128xf32>
    %cst_58 = arith.constant 1.000000e+00 : f32
    %237 = vector.broadcast %cst_58 : f32 to vector<8x128xf32>
    %238 = arith.addf %237, %236 : vector<8x128xf32>
    %239 = arith.divf %237, %238 : vector<8x128xf32>
    %240 = vector.extract_strided_slice %233 {offsets = [0, 128], sizes = [8, 128], strides = [1, 1]} : vector<8x512xf32> to vector<8x128xf32>
    %241 = arith.negf %240 : vector<8x128xf32>
    %242 = math.exp %241 : vector<8x128xf32>
    %cst_59 = arith.constant 1.000000e+00 : f32
    %243 = vector.broadcast %cst_59 : f32 to vector<8x128xf32>
    %244 = arith.addf %243, %242 : vector<8x128xf32>
    %245 = arith.divf %243, %244 : vector<8x128xf32>
    %246 = vector.extract_strided_slice %233 {offsets = [0, 256], sizes = [8, 128], strides = [1, 1]} : vector<8x512xf32> to vector<8x128xf32>
    %247 = math.tanh %246 : vector<8x128xf32>
    %248 = vector.extract_strided_slice %233 {offsets = [0, 384], sizes = [8, 128], strides = [1, 1]} : vector<8x512xf32> to vector<8x128xf32>
    %249 = arith.negf %248 : vector<8x128xf32>
    %250 = math.exp %249 : vector<8x128xf32>
    %cst_60 = arith.constant 1.000000e+00 : f32
    %251 = vector.broadcast %cst_60 : f32 to vector<8x128xf32>
    %252 = arith.addf %251, %250 : vector<8x128xf32>
    %253 = arith.divf %251, %252 : vector<8x128xf32>
    %254 = arith.mulf %245, %221 : vector<8x128xf32>
    %255 = arith.mulf %239, %247 : vector<8x128xf32>
    %256 = arith.addf %254, %255 : vector<8x128xf32>
    %257 = math.tanh %256 : vector<8x128xf32>
    %258 = arith.mulf %253, %257 : vector<8x128xf32>
    %259 = arith.addi %4, %228 : i32
    %260 = arith.index_cast %259 : i32 to index
    %c0_61 = arith.constant 0 : index
    %261 = vector.load %arg7[%260, %c0_61] : memref<64x128xf32, #tpu.memory_space<vmem>>, vector<8x128xf32>
    tpu.vector_store %arg7[%260, %c0_61], %258 {strides = array<i32>} : memref<64x128xf32, #tpu.memory_space<vmem>>, vector<8x128xf32>,
    %c7_i32 = arith.constant 7 : i32
    %c8_i32_62 = arith.constant 8 : i32
    %262 = arith.muli %c7_i32, %c8_i32_62 : i32
    %263 = tpu.assume_multiple %262, 8 : i32
    %264 = arith.index_cast %263 : i32 to index
    %c0_63 = arith.constant 0 : index
    %265 = vector.load %arg8[%264, %c0_63] : memref<64x512xf32, #tpu.memory_space<vmem>>, vector<8x512xf32>
    %266 = arith.truncf %258 : vector<8x128xf32> to vector<8x128xbf16>
    %cst_64 = arith.constant dense<0.000000e+00> : vector<8x512xf32>
    %267 = tpu.matmul %266, %14, %cst_64 {dimension_numbers = #tpu.dot_dimension_numbers<[1], [0], [0], [1], [0, 0, 1, 1], [], []>} : vector<8x128xbf16>, vector<128x512xbf16>, vector<8x512xf32> -> vector<8x512xf32>
    %268 = arith.addf %265, %267 : vector<8x512xf32>
    %269 = vector.extract_strided_slice %268 {offsets = [0, 0], sizes = [8, 128], strides = [1, 1]} : vector<8x512xf32> to vector<8x128xf32>
    %270 = arith.negf %269 : vector<8x128xf32>
    %271 = math.exp %270 : vector<8x128xf32>
    %cst_65 = arith.constant 1.000000e+00 : f32
    %272 = vector.broadcast %cst_65 : f32 to vector<8x128xf32>
    %273 = arith.addf %272, %271 : vector<8x128xf32>
    %274 = arith.divf %272, %273 : vector<8x128xf32>
    %275 = vector.extract_strided_slice %268 {offsets = [0, 128], sizes = [8, 128], strides = [1, 1]} : vector<8x512xf32> to vector<8x128xf32>
    %276 = arith.negf %275 : vector<8x128xf32>
    %277 = math.exp %276 : vector<8x128xf32>
    %cst_66 = arith.constant 1.000000e+00 : f32
    %278 = vector.broadcast %cst_66 : f32 to vector<8x128xf32>
    %279 = arith.addf %278, %277 : vector<8x128xf32>
    %280 = arith.divf %278, %279 : vector<8x128xf32>
    %281 = vector.extract_strided_slice %268 {offsets = [0, 256], sizes = [8, 128], strides = [1, 1]} : vector<8x512xf32> to vector<8x128xf32>
    %282 = math.tanh %281 : vector<8x128xf32>
    %283 = vector.extract_strided_slice %268 {offsets = [0, 384], sizes = [8, 128], strides = [1, 1]} : vector<8x512xf32> to vector<8x128xf32>
    %284 = arith.negf %283 : vector<8x128xf32>
    %285 = math.exp %284 : vector<8x128xf32>
    %cst_67 = arith.constant 1.000000e+00 : f32
    %286 = vector.broadcast %cst_67 : f32 to vector<8x128xf32>
    %287 = arith.addf %286, %285 : vector<8x128xf32>
    %288 = arith.divf %286, %287 : vector<8x128xf32>
    %289 = arith.mulf %280, %256 : vector<8x128xf32>
    %290 = arith.mulf %274, %282 : vector<8x128xf32>
    %291 = arith.addf %289, %290 : vector<8x128xf32>
    %292 = math.tanh %291 : vector<8x128xf32>
    %293 = arith.mulf %288, %292 : vector<8x128xf32>
    %294 = arith.addi %4, %263 : i32
    %295 = arith.index_cast %294 : i32 to index
    %c0_68 = arith.constant 0 : index
    %296 = vector.load %arg7[%295, %c0_68] : memref<64x128xf32, #tpu.memory_space<vmem>>, vector<8x128xf32>
    tpu.vector_store %arg7[%295, %c0_68], %293 {strides = array<i32>} : memref<64x128xf32, #tpu.memory_space<vmem>>, vector<8x128xf32>,
    %c8_i32_69 = arith.constant 8 : i32
    %c0_70 = arith.constant 0 : index
    %c0_71 = arith.constant 0 : index
    %297 = vector.load %arg9[%c0_70, %c0_71] : memref<8x128xf32, #tpu.memory_space<vmem>>, vector<8x128xf32>
    tpu.vector_store %arg9[%c0_70, %c0_71], %293 {strides = array<i32>} : memref<8x128xf32, #tpu.memory_space<vmem>>, vector<8x128xf32>,
    %c0_72 = arith.constant 0 : index
    %c0_73 = arith.constant 0 : index
    %298 = vector.load %arg10[%c0_72, %c0_73] : memref<8x128xf32, #tpu.memory_space<vmem>>, vector<8x128xf32>
    tpu.vector_store %arg10[%c0_72, %c0_73], %291 {strides = array<i32>} : memref<8x128xf32, #tpu.memory_space<vmem>>, vector<8x128xf32>,
    return
  }
  func.func @transform_0(%arg0: i32, %arg1: i32, %arg2: i32) -> (i32, i32) {
    %c1_i32 = arith.constant 1 : i32
    %0 = arith.muli %arg0, %c1_i32 : i32
    %1 = arith.addi %0, %arg2 : i32
    %c0_i32 = arith.constant 0 : i32
    %c0_i32_0 = arith.constant 0 : i32
    return %1, %c0_i32 : i32, i32
  }
  func.func @transform_1(%arg0: i32, %arg1: i32, %arg2: i32) -> (i32, i32, i32) {
    %c0_i32 = arith.constant 0 : i32
    %c0_i32_0 = arith.constant 0 : i32
    %c0_i32_1 = arith.constant 0 : i32
    return %arg1, %c0_i32, %c0_i32_0 : i32, i32, i32
  }
  func.func @transform_2(%arg0: i32, %arg1: i32, %arg2: i32) -> (i32, i32, i32) {
    %c0_i32 = arith.constant 0 : i32
    %c0_i32_0 = arith.constant 0 : i32
    %c0_i32_1 = arith.constant 0 : i32
    return %arg1, %c0_i32, %c0_i32_0 : i32, i32, i32
  }
  func.func @transform_3(%arg0: i32, %arg1: i32, %arg2: i32) -> (i32, i32, i32) {
    %c0_i32 = arith.constant 0 : i32
    %c0_i32_0 = arith.constant 0 : i32
    %c0_i32_1 = arith.constant 0 : i32
    return %arg1, %c0_i32, %c0_i32_0 : i32, i32, i32
  }
  func.func @transform_4(%arg0: i32, %arg1: i32, %arg2: i32) -> (i32, i32) {
    %c0_i32 = arith.constant 0 : i32
    %c0_i32_0 = arith.constant 0 : i32
    return %arg0, %c0_i32 : i32, i32
  }
}

</mosaic_0001>

<llo_original>
// kernel: tpu_custom_call.1
$region0: #{tpu_custom_call.1}
  #allocation0 [shape = 'u32[]', space=smem, size = 0x4, offset = 0x4, fixed_abs, tag = 'smem constant byte address 0x4 - core index']
  #allocation1 [shape = 'u32[72,128]{1,0:T(1,128)}', space=vmem, size = 0x9000, scoped, tag = 'internal scratch']
  #allocation2 [shape = 'f32[64,512]{1,0:T(8,128)}', space=vmem, size = 0x20000, scoped, tag = 'scratch operand']
  #allocation3 [shape = 'f32[8,128]{1,0:T(8,128)}', space=vmem, size = 0x1000, scoped, tag = 'scratch operand']
  #allocation4 [shape = 'f32[8,128]{1,0:T(8,128)}', space=vmem, size = 0x1000, scoped, tag = 'scratch operand']
  %s0 = inlined_call_operand.hbm [shape: bf16[64,128], index: 0, kind: input, shape index: {}]
  %s1 = inlined_call_operand.hbm [shape: bf16[2,128,512], index: 1, kind: input, shape index: {}]
  %s2 = inlined_call_operand.hbm [shape: bf16[2,128,512], index: 2, kind: input, shape index: {}]
  %s3 = inlined_call_operand.hbm [shape: f32[2,1,512], index: 3, kind: input, shape index: {}]
  %s4 = inlined_call_operand.hbm [shape: f32[64,128], index: 4, kind: output, shape index: {}]
  %s5 = sld [smem:[#allocation0]]
  $region77: #{tpu_custom_call.1} parent=0
    _
  %s7 = ssub.s32 1, %s5
  %s8 = scalar_select 0, %s7, %s5
  $region1: #{tpu_custom_call.1} parent=0
    #allocation5 [shape = 'u8[16384]{0}', space=vmem, size = 0x4000, scoped, tag = 'input window, operand 0, single buffered']
    #allocation6 [shape = 's32[2]{0}', space=sflag, size = 0x8, scoped, tag = 'scoped memory for tpu_custom_call.1']
    #allocation7 [shape = 's32[2]{0}', space=sflag, size = 0x8, scoped, tag = 'scoped memory for tpu_custom_call.1']
    #allocation8 [shape = 'u8[262144]{0}', space=vmem, size = 0x40000, scoped, tag = 'input window, operand 1']
    #allocation9 [shape = 's32[2]{0}', space=sflag, size = 0x8, scoped, tag = 'scoped memory for tpu_custom_call.1']
    #allocation10 [shape = 'u8[262144]{0}', space=vmem, size = 0x40000, scoped, tag = 'input window, operand 2']
    #allocation11 [shape = 'u8[4096]{0}', space=vmem, size = 0x1000, scoped, tag = 'input window, operand 3']
    #allocation12 [shape = 's32[2]{0}', space=sflag, size = 0x8, scoped, tag = 'scoped memory for tpu_custom_call.1']
    #allocation13 [shape = 'u8[32768]{0}', space=vmem, size = 0x8000, scoped, tag = 'output window, operand 0, single buffered']
    %9 = vsyncpa [#allocation6], 0
    %10 = vsyncpa [#allocation9], 0
    %s11 = scalar_lea.sflag [#allocation9], 1
    %12 = vsyncpa %s11, 0
    %13 = vsyncpa [#allocation12], 0
    %s14 = scalar_lea.sflag [#allocation12], 1
    %15 = vsyncpa %s14, 0
    %16 = vsyncpa [#allocation7], 0
    loop: start=0, step=1, limit=4
    $region2: #{tpu_custom_call.1} parent=1 // loop_pre_header
      _
    $region3: #{tpu_custom_call.1} parent=1 // loop_header
      %s18 = sphi 0, %s22
      %p19 = scmp.ge.s32.totalorder %s18, 4
      %s25 = sphi 0, %s44
      %s26 = sphi 0, %s40
      %s27 = sphi 0, %s36
      %s28 = sphi 0, %s25
      %s29 = sphi 0, %s26
      %s30 = sphi 0, %s27
      %s31 = sphi 0, %s28
      %s32 = sphi 0, %s29
      %s33 = sphi 0, %s30
      %s49 = sphi 0, %s51
      %s52 = sphi 0, %s49
      %s53 = sphi 0, %s52
      %s69 = sphi 0, %s53
      %s75 = sphi 0, %s77
      %s78 = sphi 0, %s75
      %s79 = sphi 0, %s78
      %s95 = sphi 0, %s79
      %s101 = sphi 0, %s103
      %s104 = sphi 0, %s101
      %s105 = sphi 0, %s104
      %s121 = sphi 0, %s105
      %s127 = sphi 0, %s129
      %s130 = sphi 0, %s127
      %s131 = sphi 0, %s130
      %s147 = sphi 0, %s131
      %s153 = sphi 0, %s155
      %s156 = sphi 0, %s153
      %s157 = sphi 0, %s156
      %s173 = sphi 0, %s157
    $region4: #{tpu_custom_call.1} parent=1 // loop_header_branch
      %21 = sbr.rel (%p19) target = $region8
    $region5: #{tpu_custom_call.1} parent=1 // loop_body
      %s23 = ssub.s32 %s18, 1
      %s24 = ssub.s32 %s18, 2
      %s34 = sadd.s32 1, %s27
      %p35 = scmp.ge.s32.totalorder %s34, 1
      %s36 = scalar_select %p35, 0, %s34
      %s37 = sadd.s32 1, %s26
      %s38 = scalar_select %p35, %s37, %s26
      %p39 = scmp.ge.s32.totalorder %s38, 2
      %s40 = scalar_select %p39, 0, %s38
      %s41 = sadd.s32 1, %s25
      %s42 = scalar_select %p39, %s41, %s25
      %p43 = scmp.ge.s32.totalorder %s42, 1
      %s44 = scalar_select %p43, 0, %s42
      %s45 = sadd.s32 %s25, %s27
      %s46 = sadd.s32 %s44, %s36
      %s47 = ssub.s32 %s45, %s46
      %p48 = scmp.eq.s32.totalorder %s47, 0
      %s50 = sadd.s32 %s49, 1
      %s51 = scalar_select %p48, %s49, %s50
      %p54 = pneg %p48
      %p55 = scmp.eq.s32.totalorder %s18, 1
      %p56 = por %p54, %p55
      %p57 = scmp.ne.s32.totalorder %s49, %s52
      %p58 = scmp.eq.s32.totalorder %s18, 0
      %p59 = por %p57, %p58
      %p60 = scmp.ne.s32.totalorder %s49, %s52
      %p61 = scmp.eq.s32.totalorder %s23, 1
      %p62 = por %p60, %p61
      %p63 = scmp.ne.s32.totalorder %s52, %s53
      %p64 = scmp.eq.s32.totalorder %s23, 0
      %p65 = por %p63, %p64
      %p66 = scmp.ne.s32.totalorder %s52, %s53
      %p67 = scmp.eq.s32.totalorder %s24, 1
      %p68 = por %p66, %p67
      %p70 = scmp.ne.s32.totalorder %s53, %s69
      %p71 = scmp.eq.s32.totalorder %s24, 0
      %p72 = por %p70, %p71
      %s73 = ssub.s32 %s26, %s40
      %p74 = scmp.eq.s32.totalorder %s73, 0
      %s76 = sadd.s32 %s75, 1
      %s77 = scalar_select %p74, %s75, %s76
      %p80 = pneg %p74
      %p81 = scmp.eq.s32.totalorder %s18, 1
      %p82 = por %p80, %p81
      %p83 = scmp.ne.s32.totalorder %s75, %s78
      %p84 = scmp.eq.s32.totalorder %s18, 0
      %p85 = por %p83, %p84
      %p86 = scmp.ne.s32.totalorder %s75, %s78
      %p87 = scmp.eq.s32.totalorder %s23, 1
      %p88 = por %p86, %p87
      %p89 = scmp.ne.s32.totalorder %s78, %s79
      %p90 = scmp.eq.s32.totalorder %s23, 0
      %p91 = por %p89, %p90
      %p92 = scmp.ne.s32.totalorder %s78, %s79
      %p93 = scmp.eq.s32.totalorder %s24, 1
      %p94 = por %p92, %p93
      %p96 = scmp.ne.s32.totalorder %s79, %s95
      %p97 = scmp.eq.s32.totalorder %s24, 0
      %p98 = por %p96, %p97
      %s99 = ssub.s32 %s26, %s40
      %p100 = scmp.eq.s32.totalorder %s99, 0
      %s102 = sadd.s32 %s101, 1
      %s103 = scalar_select %p100, %s101, %s102
      %p106 = pneg %p100
      %p107 = scmp.eq.s32.totalorder %s18, 1
      %p108 = por %p106, %p107
      %p109 = scmp.ne.s32.totalorder %s101, %s104
      %p110 = scmp.eq.s32.totalorder %s18, 0
      %p111 = por %p109, %p110
      %p112 = scmp.ne.s32.totalorder %s101, %s104
      %p113 = scmp.eq.s32.totalorder %s23, 1
      %p114 = por %p112, %p113
      %p115 = scmp.ne.s32.totalorder %s104, %s105
      %p116 = scmp.eq.s32.totalorder %s23, 0
      %p117 = por %p115, %p116
      %p118 = scmp.ne.s32.totalorder %s104, %s105
      %p119 = scmp.eq.s32.totalorder %s24, 1
      %p120 = por %p118, %p119
      %p122 = scmp.ne.s32.totalorder %s105, %s121
      %p123 = scmp.eq.s32.totalorder %s24, 0
      %p124 = por %p122, %p123
      %s125 = ssub.s32 %s26, %s40
      %p126 = scmp.eq.s32.totalorder %s125, 0
      %s128 = sadd.s32 %s127, 1
      %s129 = scalar_select %p126, %s127, %s128
      %p132 = pneg %p126
      %p133 = scmp.eq.s32.totalorder %s18, 1
      %p134 = por %p132, %p133
      %p135 = scmp.ne.s32.totalorder %s127, %s130
      %p136 = scmp.eq.s32.totalorder %s18, 0
      %p137 = por %p135, %p136
      %p138 = scmp.ne.s32.totalorder %s127, %s130
      %p139 = scmp.eq.s32.totalorder %s23, 1
      %p140 = por %p138, %p139
      %p141 = scmp.ne.s32.totalorder %s130, %s131
      %p142 = scmp.eq.s32.totalorder %s23, 0
      %p143 = por %p141, %p142
      %p144 = scmp.ne.s32.totalorder %s130, %s131
      %p145 = scmp.eq.s32.totalorder %s24, 1
      %p146 = por %p144, %p145
      %p148 = scmp.ne.s32.totalorder %s131, %s147
      %p149 = scmp.eq.s32.totalorder %s24, 0
      %p150 = por %p148, %p149
      %s151 = ssub.s32 %s25, %s44
      %p152 = scmp.eq.s32.totalorder %s151, 0
      %s154 = sadd.s32 %s153, 1
      %s155 = scalar_select %p152, %s153, %s154
      %p158 = pneg %p152
      %p159 = scmp.eq.s32.totalorder %s18, 1
      %p160 = por %p158, %p159
      %p161 = scmp.ne.s32.totalorder %s153, %s156
      %p162 = scmp.eq.s32.totalorder %s18, 0
      %p163 = por %p161, %p162
      %p164 = scmp.ne.s32.totalorder %s153, %s156
      %p165 = scmp.eq.s32.totalorder %s23, 1
      %p166 = por %p164, %p165
      %p167 = scmp.ne.s32.totalorder %s156, %s157
      %p168 = scmp.eq.s32.totalorder %s23, 0
      %p169 = por %p167, %p168
      %p170 = scmp.ne.s32.totalorder %s156, %s157
      %p171 = scmp.eq.s32.totalorder %s24, 1
      %p172 = por %p170, %p171
      %p174 = scmp.ne.s32.totalorder %s157, %s173
      %p175 = scmp.eq.s32.totalorder %s24, 0
      %p176 = por %p174, %p175
      %p177 = scmp.le.s32.totalorder 1, %s18
      %p178 = scmp.lt.s32.totalorder %s18, 3
      %p179 = pnand %p177, %p178
      %p180 = pneg %p179
      // Predicated region
      $region9: #{tpu_custom_call.1} parent=5 // pred_check
        _
      $region10: #{tpu_custom_call.1} parent=5 // pred_check_branch
        %182 = sbr.rel (%p179) target = $region12
      $region11: #{tpu_custom_call.1} parent=5 // pred_region
        %s183 = ssub.s32 %s18, 1
        // Predicated region
        $region13: #{tpu_custom_call.1} parent=11 // pred_check
          %p184 = pneg %p65
        $region14: #{tpu_custom_call.1} parent=11 // pred_check_branch
          %186 = sbr.rel (%p184) target = $region16
        $region15: #{tpu_custom_call.1} parent=11 // pred_region
          %s187 = sadd.s32 %s28, %s30
          %s188 = smul.u32 8, %s187
          %190 = vsyncadd [#allocation6], 0
          %s191 = smul.addr %s188, 4
          %s192 = scalar_lea.hbm %s0, %s191
          %s193 = sshll.u32 %s192, 4
          %s194 = int_to_ptr.hbm [resolvable:$true] %s193
          %s195 = sshll.u32 [#allocation5], 4
          %s196 = int_to_ptr.vmem [resolvable:$true] %s195
          %201 = dma.hbm_to_vmem [thread:$0]  %s194, 512, %s196, [#allocation6], 64, 64, 4
        $region16: #{tpu_custom_call.1} parent=11 // pred_fallthru
          _
      $region12: #{tpu_custom_call.1} parent=5 // pred_fallthru
        _
      %p202 = scmp.lt.s32.totalorder %s18, 2
      // Predicated region
      $region17: #{tpu_custom_call.1} parent=5 // pred_check
        %p203 = pneg %p202
      $region18: #{tpu_custom_call.1} parent=5 // pred_check_branch
        %205 = sbr.rel (%p203) target = $region20
      $region19: #{tpu_custom_call.1} parent=5 // pred_region
        // Predicated region
        $region21: #{tpu_custom_call.1} parent=19 // pred_check
          %p206 = pneg %p85
        $region22: #{tpu_custom_call.1} parent=19 // pred_check_branch
          %208 = sbr.rel (%p206) target = $region24
        $region23: #{tpu_custom_call.1} parent=19 // pred_region
          %s209 = sand.u32 %s18, 1
          %s210 = scalar_lea.sflag [#allocation9], %s209
          %s211 = sand.u32 %s75, 1
          %s212 = smul.addr %s211, 256
          %s213 = scalar_lea.vmem [#allocation8], %s212
          %215 = vsyncadd %s210, 0
          %s216 = smul.addr %s26, 64
          %s217 = smul.addr %s216, 4
          %s218 = scalar_lea.hbm %s1, %s217
          %s219 = sshll.u32 %s218, 4
          %s220 = int_to_ptr.hbm [resolvable:$true] %s219
          %s221 = sshll.u32 %s213, 4
          %s222 = int_to_ptr.vmem [resolvable:$true] %s221
          %227 = dma.hbm_to_vmem [thread:$0]  %s220, 4096, %s222, %s210, 256, 256, 16
        $region24: #{tpu_custom_call.1} parent=19 // pred_fallthru
          _
        // Predicated region
        $region25: #{tpu_custom_call.1} parent=19 // pred_check
          %p228 = pneg %p111
        $region26: #{tpu_custom_call.1} parent=19 // pred_check_branch
          %230 = sbr.rel (%p228) target = $region28
        $region27: #{tpu_custom_call.1} parent=19 // pred_region
          %s231 = sand.u32 %s18, 1
          %s232 = scalar_lea.sflag [#allocation9], %s231
          %s233 = sand.u32 %s101, 1
          %s234 = smul.addr %s233, 256
          %s235 = scalar_lea.vmem [#allocation10], %s234
          %237 = vsyncadd %s232, 0
          %s238 = smul.addr %s26, 64
          %s239 = smul.addr %s238, 4
          %s240 = scalar_lea.hbm %s2, %s239
          %s241 = sshll.u32 %s240, 4
          %s242 = int_to_ptr.hbm [resolvable:$true] %s241
          %s243 = sshll.u32 %s235, 4
          %s244 = int_to_ptr.vmem [resolvable:$true] %s243
          %249 = dma.hbm_to_vmem [thread:$0]  %s242, 4096, %s244, %s232, 256, 256, 16
        $region28: #{tpu_custom_call.1} parent=19 // pred_fallthru
          _
        // Predicated region
        $region29: #{tpu_custom_call.1} parent=19 // pred_check
          %p250 = pneg %p137
        $region30: #{tpu_custom_call.1} parent=19 // pred_check_branch
          %252 = sbr.rel (%p250) target = $region32
        $region31: #{tpu_custom_call.1} parent=19 // pred_region
          %s253 = sand.u32 %s127, 1
          %s254 = scalar_lea.sflag [#allocation12], %s253
          %s255 = sand.u32 %s127, 1
          %s256 = smul.addr %s255, 4
          %s257 = scalar_lea.vmem [#allocation11], %s256
          %259 = vsyncadd %s254, 0
          %s260 = smul.addr %s26, 4
          %s261 = scalar_lea.hbm %s3, %s260
          %s263 = sshll.u32 %s261, 4
          %s264 = int_to_ptr.hbm [resolvable:$true] %s263
          %s265 = sshll.u32 %s257, 4
          %s266 = int_to_ptr.vmem [resolvable:$true] %s265
          %268 = dma.hbm_to_vmem [thread:$0]  %s264, 64, %s266, %s254
        $region32: #{tpu_custom_call.1} parent=19 // pred_fallthru
          _
      $region20: #{tpu_custom_call.1} parent=5 // pred_fallthru
        _
      %p269 = scmp.le.s32.totalorder 1, %s18
      %p270 = scmp.lt.s32.totalorder %s18, 3
      %p271 = pnand %p269, %p270
      %p272 = pneg %p271
      // Predicated region
      $region33: #{tpu_custom_call.1} parent=5 // pred_check
        _
      $region34: #{tpu_custom_call.1} parent=5 // pred_check_branch
        %274 = sbr.rel (%p271) target = $region36
      $region35: #{tpu_custom_call.1} parent=5 // pred_region
        %s275 = ssub.s32 %s18, 1
        // Predicated region
        $region37: #{tpu_custom_call.1} parent=35 // pred_check
          %p276 = pneg %p65
        $region38: #{tpu_custom_call.1} parent=35 // pred_check_branch
          %278 = sbr.rel (%p276) target = $region40
        $region39: #{tpu_custom_call.1} parent=35 // pred_region
          %280 = dma.done [#allocation6], 512
        $region40: #{tpu_custom_call.1} parent=35 // pred_fallthru
          _
        %s281 = sand.u32 %s23, 1
        %s282 = scalar_lea.sflag [#allocation9], %s281
        %s283 = sand.u32 %s78, 1
        %s284 = smul.addr %s283, 256
        %s285 = scalar_lea.vmem [#allocation8], %s284
        // Predicated region
        $region41: #{tpu_custom_call.1} parent=35 // pred_check
          %p286 = pneg %p91
        $region42: #{tpu_custom_call.1} parent=35 // pred_check_branch
          %288 = sbr.rel (%p286) target = $region44
        $region43: #{tpu_custom_call.1} parent=35 // pred_region
          %290 = dma.done %s282, 4096
        $region44: #{tpu_custom_call.1} parent=35 // pred_fallthru
          _
        %s291 = sand.u32 %s23, 1
        %s292 = scalar_lea.sflag [#allocation9], %s291
        %s293 = sand.u32 %s104, 1
        %s294 = smul.addr %s293, 256
        %s295 = scalar_lea.vmem [#allocation10], %s294
        // Predicated region
        $region45: #{tpu_custom_call.1} parent=35 // pred_check
          %p296 = pneg %p117
        $region46: #{tpu_custom_call.1} parent=35 // pred_check_branch
          %298 = sbr.rel (%p296) target = $region48
        $region47: #{tpu_custom_call.1} parent=35 // pred_region
          %300 = dma.done %s292, 4096
        $region48: #{tpu_custom_call.1} parent=35 // pred_fallthru
          _
        %s301 = sand.u32 %s130, 1
        %s302 = scalar_lea.sflag [#allocation12], %s301
        %s303 = sand.u32 %s130, 1
        %s304 = smul.addr %s303, 4
        %s305 = scalar_lea.vmem [#allocation11], %s304
        // Predicated region
        $region49: #{tpu_custom_call.1} parent=35 // pred_check
          %p306 = pneg %p143
        $region50: #{tpu_custom_call.1} parent=35 // pred_check_branch
          %308 = sbr.rel (%p306) target = $region52
        $region51: #{tpu_custom_call.1} parent=35 // pred_region
          %310 = dma.done %s302, 64
        $region52: #{tpu_custom_call.1} parent=35 // pred_fallthru
          _
        %p311 = pneg %p65
        %p312 = pneg %p62
        %s313 = sand.u32 %s23, 1
        %s314 = scalar_lea.sflag [#allocation9], %s313
        %s315 = sand.u32 %s78, 1
        %s316 = smul.addr %s315, 256
        %s317 = scalar_lea.vmem [#allocation8], %s316
        %p318 = pneg %p91
        %p319 = pneg %p88
        %s320 = sand.u32 %s23, 1
        %s321 = scalar_lea.sflag [#allocation9], %s320
        %s322 = sand.u32 %s104, 1
        %s323 = smul.addr %s322, 256
        %s324 = scalar_lea.vmem [#allocation10], %s323
        %p325 = pneg %p117
        %p326 = pneg %p114
        %s327 = sand.u32 %s130, 1
        %s328 = scalar_lea.sflag [#allocation12], %s327
        %s329 = sand.u32 %s130, 1
        %s330 = smul.addr %s329, 4
        %s331 = scalar_lea.vmem [#allocation11], %s330
        %p332 = pneg %p143
        %p333 = pneg %p140
        %p334 = pneg %p169
        %p335 = pneg %p166
        %s336 = sadd.s32 %s28, %s30
        %s337 = smul.u32 8, %s336
        %s338 = smul.u32 8, %s28
        %p339 = scmp.eq.s32.totalorder %s30, 0
        // Predicated region
        $region53: #{tpu_custom_call.1} parent=35 // pred_check
          %p340 = pneg %p339
        $region54: #{tpu_custom_call.1} parent=35 // pred_check_branch
          %342 = sbr.rel (%p340) target = $region56
        $region55: #{tpu_custom_call.1} parent=35 // pred_region
          %343 = vst [vmem:[#allocation3] sm:$0xff] 0.0
          %344 = vst [vmem:[#allocation4] sm:$0xff] 0.0
        $region56: #{tpu_custom_call.1} parent=35 // pred_fallthru
          _
        %s345 = smul.u32 %s30, 64
        %v346 = vld [vmem:[%s305] sm:$0xf]
        %p347 = scmp.eq.s32.totalorder %s29, 0
        // Predicated region
        $region57: #{tpu_custom_call.1} parent=35 // pred_check
          %p348 = pneg %p347
        $region58: #{tpu_custom_call.1} parent=35 // pred_check_branch
          %350 = sbr.rel (%p348) target = $region60
        $region59: #{tpu_custom_call.1} parent=35 // pred_region
          %v351 = vld [vmem:[#allocation5] sm:$0xf]
          %v352 = vld [vmem:[#allocation5 + $0x4] sm:$0xf]
          %v353 = vld [vmem:[#allocation5 + $0x8] sm:$0xf]
          %v354 = vld [vmem:[#allocation5 + $0xc] sm:$0xf]
          %v355 = vld [vmem:[#allocation5 + $0x10] sm:$0xf]
          %v356 = vld [vmem:[#allocation5 + $0x14] sm:$0xf]
          %v357 = vld [vmem:[#allocation5 + $0x18] sm:$0xf]
          %v358 = vld [vmem:[#allocation5 + $0x1c] sm:$0xf]
          %v359 = vld [vmem:[%s285] sm:$0xff]
          %v360 = vld [vmem:[%s285 + $0x8] sm:$0xff]
          %v361 = vld [vmem:[%s285 + $0x10] sm:$0xff]
          %v362 = vld [vmem:[%s285 + $0x18] sm:$0xff]
          %v363 = vld [vmem:[%s285 + $0x20] sm:$0xff]
          %v364 = vld [vmem:[%s285 + $0x28] sm:$0xff]
          %v365 = vld [vmem:[%s285 + $0x30] sm:$0xff]
          %v366 = vld [vmem:[%s285 + $0x38] sm:$0xff]
          %v367 = vld [vmem:[%s285 + $0x40] sm:$0xff]
          %v368 = vld [vmem:[%s285 + $0x48] sm:$0xff]
          %v369 = vld [vmem:[%s285 + $0x50] sm:$0xff]
          %v370 = vld [vmem:[%s285 + $0x58] sm:$0xff]
          %v371 = vld [vmem:[%s285 + $0x60] sm:$0xff]
          %v372 = vld [vmem:[%s285 + $0x68] sm:$0xff]
          %v373 = vld [vmem:[%s285 + $0x70] sm:$0xff]
          %v374 = vld [vmem:[%s285 + $0x78] sm:$0xff]
          %v375 = vld [vmem:[%s285 + $0x80] sm:$0xff]
          %v376 = vld [vmem:[%s285 + $0x88] sm:$0xff]
          %v377 = vld [vmem:[%s285 + $0x90] sm:$0xff]
          %v378 = vld [vmem:[%s285 + $0x98] sm:$0xff]
          %v379 = vld [vmem:[%s285 + $0xa0] sm:$0xff]
          %v380 = vld [vmem:[%s285 + $0xa8] sm:$0xff]
          %v381 = vld [vmem:[%s285 + $0xb0] sm:$0xff]
          %v382 = vld [vmem:[%s285 + $0xb8] sm:$0xff]
          %v383 = vld [vmem:[%s285 + $0xc0] sm:$0xff]
          %v384 = vld [vmem:[%s285 + $0xc8] sm:$0xff]
          %v385 = vld [vmem:[%s285 + $0xd0] sm:$0xff]
          %v386 = vld [vmem:[%s285 + $0xd8] sm:$0xff]
          %v387 = vld [vmem:[%s285 + $0xe0] sm:$0xff]
          %v388 = vld [vmem:[%s285 + $0xe8] sm:$0xff]
          %v389 = vld [vmem:[%s285 + $0xf0] sm:$0xff]
          %v390 = vld [vmem:[%s285 + $0xf8] sm:$0xff]
          %v392 = vperm.slane %v346, 0
          %v393 = vperm.slane %v346, 1
          %v394 = vperm.slane %v346, 2
          %v395 = vperm.slane %v346, 3
          %v408 = vunpack.c.l.b16 %v351
          %v409 = vunpack.c.l.b16 %v352
          %v410 = vunpack.c.l.b16 %v353
          %v411 = vunpack.c.l.b16 %v354
          %v412 = vunpack.c.l.b16 %v355
          %v413 = vunpack.c.l.b16 %v356
          %v414 = vunpack.c.l.b16 %v357
          %v415 = vunpack.c.l.b16 %v358
          %v416 = vpack.c.b16 %v409, %v408
          %v417 = vpack.c.b16 %v411, %v410
          %v418 = vpack.c.b16 %v413, %v412
          %v419 = vpack.c.b16 %v415, %v414
          %v456 = vunpack.c.l.b16 %v359
          %v457 = vunpack.c.h.b16 %v359
          %v458 = vunpack.c.l.b16 %v360
          %v459 = vunpack.c.h.b16 %v360
          %v460 = vunpack.c.l.b16 %v361
          %v461 = vunpack.c.h.b16 %v361
          %v462 = vunpack.c.l.b16 %v362
          %v463 = vunpack.c.h.b16 %v362
          %v464 = vunpack.c.l.b16 %v363
          %v465 = vunpack.c.h.b16 %v363
          %v466 = vunpack.c.l.b16 %v364
          %v467 = vunpack.c.h.b16 %v364
          %v468 = vunpack.c.l.b16 %v365
          %v469 = vunpack.c.h.b16 %v365
          %v470 = vunpack.c.l.b16 %v366
          %v471 = vunpack.c.h.b16 %v366
          %v472 = vunpack.c.l.b16 %v367
          %v473 = vunpack.c.h.b16 %v367
          %v474 = vunpack.c.l.b16 %v368
          %v475 = vunpack.c.h.b16 %v368
          %v476 = vunpack.c.l.b16 %v369
          %v477 = vunpack.c.h.b16 %v369
          %v478 = vunpack.c.l.b16 %v370
          %v479 = vunpack.c.h.b16 %v370
          %v480 = vunpack.c.l.b16 %v371
          %v481 = vunpack.c.h.b16 %v371
          %v482 = vunpack.c.l.b16 %v372
          %v483 = vunpack.c.h.b16 %v372
          %v484 = vunpack.c.l.b16 %v373
          %v485 = vunpack.c.h.b16 %v373
          %v486 = vunpack.c.l.b16 %v374
          %v487 = vunpack.c.h.b16 %v374
          %v488 = vunpack.c.l.b16 %v375
          %v489 = vunpack.c.h.b16 %v375
          %v490 = vunpack.c.l.b16 %v376
          %v491 = vunpack.c.h.b16 %v376
          %v492 = vunpack.c.l.b16 %v377
          %v493 = vunpack.c.h.b16 %v377
          %v494 = vunpack.c.l.b16 %v378
          %v495 = vunpack.c.h.b16 %v378
          %v496 = vunpack.c.l.b16 %v379
          %v497 = vunpack.c.h.b16 %v379
          %v498 = vunpack.c.l.b16 %v380
          %v499 = vunpack.c.h.b16 %v380
          %v500 = vunpack.c.l.b16 %v381
          %v501 = vunpack.c.h.b16 %v381
          %v502 = vunpack.c.l.b16 %v382
          %v503 = vunpack.c.h.b16 %v382
          %v504 = vunpack.c.l.b16 %v383
          %v505 = vunpack.c.h.b16 %v383
          %v506 = vunpack.c.l.b16 %v384
          %v507 = vunpack.c.h.b16 %v384
          %v508 = vunpack.c.l.b16 %v385
          %v509 = vunpack.c.h.b16 %v385
          %v510 = vunpack.c.l.b16 %v386
          %v511 = vunpack.c.h.b16 %v386
          %v512 = vunpack.c.l.b16 %v387
          %v513 = vunpack.c.h.b16 %v387
          %v514 = vunpack.c.l.b16 %v388
          %v515 = vunpack.c.h.b16 %v388
          %v516 = vunpack.c.l.b16 %v389
          %v517 = vunpack.c.h.b16 %v389
          %v518 = vunpack.c.l.b16 %v390
          %v519 = vunpack.c.h.b16 %v390
          %v520 = vpack.c.b16 %v460, %v456
          %v521 = vpack.c.b16 %v461, %v457
          %v522 = vpack.c.b16 %v462, %v458
          %v523 = vpack.c.b16 %v463, %v459
          %v524 = vpack.c.b16 %v468, %v464
          %v525 = vpack.c.b16 %v469, %v465
          %v526 = vpack.c.b16 %v470, %v466
          %v527 = vpack.c.b16 %v471, %v467
          %v528 = vpack.c.b16 %v476, %v472
          %v529 = vpack.c.b16 %v477, %v473
          %v530 = vpack.c.b16 %v478, %v474
          %v531 = vpack.c.b16 %v479, %v475
          %v532 = vpack.c.b16 %v484, %v480
          %v533 = vpack.c.b16 %v485, %v481
          %v534 = vpack.c.b16 %v486, %v482
          %v535 = vpack.c.b16 %v487, %v483
          %v536 = vpack.c.b16 %v492, %v488
          %v537 = vpack.c.b16 %v493, %v489
          %v538 = vpack.c.b16 %v494, %v490
          %v539 = vpack.c.b16 %v495, %v491
          %v540 = vpack.c.b16 %v500, %v496
          %v541 = vpack.c.b16 %v501, %v497
          %v542 = vpack.c.b16 %v502, %v498
          %v543 = vpack.c.b16 %v503, %v499
          %v544 = vpack.c.b16 %v508, %v504
          %v545 = vpack.c.b16 %v509, %v505
          %v546 = vpack.c.b16 %v510, %v506
          %v547 = vpack.c.b16 %v511, %v507
          %v548 = vpack.c.b16 %v516, %v512
          %v549 = vpack.c.b16 %v517, %v513
          %v550 = vpack.c.b16 %v518, %v514
          %v551 = vpack.c.b16 %v519, %v515
          %584 = vmatpush.bf16.msra.mxu0 %v548
          %585 = vmatpush.bf16.msra.mxu0 %v544
          %586 = vmatpush.bf16.msra.mxu0 %v540
          %587 = vmatpush.bf16.msra.mxu0 %v536
          %588 = vmatpush.bf16.msra.mxu0 %v532
          %589 = vmatpush.bf16.msra.mxu0 %v528
          %590 = vmatpush.bf16.msra.mxu0 %v524
          %591 = vmatpush.bf16.msra.mxu0 %v520
          %592 = vmatmul.bf16.gmra.mxu0 %v416
          %v593 = vpop.f32.mrf.mxu0
          %v594 = vadd.f32 %v392, %v593
          %v595 = vpop.f32.mrf.mxu0
          %v596 = vadd.f32 %v392, %v595
          %597 = vmatmul.bf16.gmra.mxu0 %v417
          %v598 = vpop.f32.mrf.mxu0
          %v599 = vadd.f32 %v392, %v598
          %v600 = vpop.f32.mrf.mxu0
          %v601 = vadd.f32 %v392, %v600
          %602 = vmatmul.bf16.gmra.mxu0 %v418
          %v603 = vpop.f32.mrf.mxu0
          %v604 = vadd.f32 %v392, %v603
          %v605 = vpop.f32.mrf.mxu0
          %v606 = vadd.f32 %v392, %v605
          %607 = vmatmul.bf16.gmra.mxu0 %v419
          %v608 = vpop.f32.mrf.mxu0
          %v609 = vadd.f32 %v392, %v608
          %v610 = vpop.f32.mrf.mxu0
          %v611 = vadd.f32 %v392, %v610
          %612 = vdwg.mxu0
          %613 = vmatpush.bf16.msra.mxu0 %v549
          %614 = vmatpush.bf16.msra.mxu0 %v545
          %615 = vmatpush.bf16.msra.mxu0 %v541
          %616 = vmatpush.bf16.msra.mxu0 %v537
          %617 = vmatpush.bf16.msra.mxu0 %v533
          %618 = vmatpush.bf16.msra.mxu0 %v529
          %619 = vmatpush.bf16.msra.mxu0 %v525
          %620 = vmatpush.bf16.msra.mxu0 %v521
          %621 = vmatmul.bf16.gmra.mxu0 %v416
          %v622 = vpop.f32.mrf.mxu0
          %v623 = vadd.f32 %v393, %v622
          %v624 = vpop.f32.mrf.mxu0
          %v625 = vadd.f32 %v393, %v624
          %626 = vmatmul.bf16.gmra.mxu0 %v417
          %v627 = vpop.f32.mrf.mxu0
          %v628 = vadd.f32 %v393, %v627
          %v629 = vpop.f32.mrf.mxu0
          %v630 = vadd.f32 %v393, %v629
          %631 = vmatmul.bf16.gmra.mxu0 %v418
          %v632 = vpop.f32.mrf.mxu0
          %v633 = vadd.f32 %v393, %v632
          %v634 = vpop.f32.mrf.mxu0
          %v635 = vadd.f32 %v393, %v634
          %636 = vmatmul.bf16.gmra.mxu0 %v419
          %v637 = vpop.f32.mrf.mxu0
          %v638 = vadd.f32 %v393, %v637
          %v639 = vpop.f32.mrf.mxu0
          %v640 = vadd.f32 %v393, %v639
          %641 = vdwg.mxu0
          %642 = vmatpush.bf16.msra.mxu0 %v550
          %643 = vmatpush.bf16.msra.mxu0 %v546
          %644 = vmatpush.bf16.msra.mxu0 %v542
          %645 = vmatpush.bf16.msra.mxu0 %v538
          %646 = vmatpush.bf16.msra.mxu0 %v534
          %647 = vmatpush.bf16.msra.mxu0 %v530
          %648 = vmatpush.bf16.msra.mxu0 %v526
          %649 = vmatpush.bf16.msra.mxu0 %v522
          %650 = vmatmul.bf16.gmra.mxu0 %v416
          %v651 = vpop.f32.mrf.mxu0
          %v652 = vadd.f32 %v394, %v651
          %v653 = vpop.f32.mrf.mxu0
          %v654 = vadd.f32 %v394, %v653
          %655 = vmatmul.bf16.gmra.mxu0 %v417
          %v656 = vpop.f32.mrf.mxu0
          %v657 = vadd.f32 %v394, %v656
          %v658 = vpop.f32.mrf.mxu0
          %v659 = vadd.f32 %v394, %v658
          %660 = vmatmul.bf16.gmra.mxu0 %v418
          %v661 = vpop.f32.mrf.mxu0
          %v662 = vadd.f32 %v394, %v661
          %v663 = vpop.f32.mrf.mxu0
          %v664 = vadd.f32 %v394, %v663
          %665 = vmatmul.bf16.gmra.mxu0 %v419
          %v666 = vpop.f32.mrf.mxu0
          %v667 = vadd.f32 %v394, %v666
          %v668 = vpop.f32.mrf.mxu0
          %v669 = vadd.f32 %v394, %v668
          %670 = vdwg.mxu0
          %671 = vmatpush.bf16.msra.mxu0 %v551
          %672 = vmatpush.bf16.msra.mxu0 %v547
          %673 = vmatpush.bf16.msra.mxu0 %v543
          %674 = vmatpush.bf16.msra.mxu0 %v539
          %675 = vmatpush.bf16.msra.mxu0 %v535
          %676 = vmatpush.bf16.msra.mxu0 %v531
          %677 = vmatpush.bf16.msra.mxu0 %v527
          %678 = vmatpush.bf16.msra.mxu0 %v523
          %679 = vmatmul.bf16.gmra.mxu0 %v416
          %v680 = vpop.f32.mrf.mxu0
          %v681 = vadd.f32 %v395, %v680
          %v682 = vpop.f32.mrf.mxu0
          %v683 = vadd.f32 %v395, %v682
          %684 = vmatmul.bf16.gmra.mxu0 %v417
          %v685 = vpop.f32.mrf.mxu0
          %v686 = vadd.f32 %v395, %v685
          %v687 = vpop.f32.mrf.mxu0
          %v688 = vadd.f32 %v395, %v687
          %689 = vmatmul.bf16.gmra.mxu0 %v418
          %v690 = vpop.f32.mrf.mxu0
          %v691 = vadd.f32 %v395, %v690
          %v692 = vpop.f32.mrf.mxu0
          %v693 = vadd.f32 %v395, %v692
          %694 = vmatmul.bf16.gmra.mxu0 %v419
          %v695 = vpop.f32.mrf.mxu0
          %v696 = vadd.f32 %v395, %v695
          %v697 = vpop.f32.mrf.mxu0
          %v698 = vadd.f32 %v395, %v697
          %699 = vdwg.mxu0
          %700 = vst [vmem:[#allocation2] sm:$0xff] %v594
          %701 = vst [vmem:[#allocation2 + $0x8] sm:$0xff] %v623
          %702 = vst [vmem:[#allocation2 + $0x10] sm:$0xff] %v652
          %703 = vst [vmem:[#allocation2 + $0x18] sm:$0xff] %v681
          %704 = vst [vmem:[#allocation2 + $0x20] sm:$0xff] %v596
          %705 = vst [vmem:[#allocation2 + $0x28] sm:$0xff] %v625
          %706 = vst [vmem:[#allocation2 + $0x30] sm:$0xff] %v654
          %707 = vst [vmem:[#allocation2 + $0x38] sm:$0xff] %v683
          %708 = vst [vmem:[#allocation2 + $0x40] sm:$0xff] %v599
          %709 = vst [vmem:[#allocation2 + $0x48] sm:$0xff] %v628
          %710 = vst [vmem:[#allocation2 + $0x50] sm:$0xff] %v657
          %711 = vst [vmem:[#allocation2 + $0x58] sm:$0xff] %v686
          %712 = vst [vmem:[#allocation2 + $0x60] sm:$0xff] %v601
          %713 = vst [vmem:[#allocation2 + $0x68] sm:$0xff] %v630
          %714 = vst [vmem:[#allocation2 + $0x70] sm:$0xff] %v659
          %715 = vst [vmem:[#allocation2 + $0x78] sm:$0xff] %v688
          %716 = vst [vmem:[#allocation2 + $0x80] sm:$0xff] %v604
          %717 = vst [vmem:[#allocation2 + $0x88] sm:$0xff] %v633
          %718 = vst [vmem:[#allocation2 + $0x90] sm:$0xff] %v662
          %719 = vst [vmem:[#allocation2 + $0x98] sm:$0xff] %v691
          %720 = vst [vmem:[#allocation2 + $0xa0] sm:$0xff] %v606
          %721 = vst [vmem:[#allocation2 + $0xa8] sm:$0xff] %v635
          %722 = vst [vmem:[#allocation2 + $0xb0] sm:$0xff] %v664
          %723 = vst [vmem:[#allocation2 + $0xb8] sm:$0xff] %v693
          %724 = vst [vmem:[#allocation2 + $0xc0] sm:$0xff] %v609
          %725 = vst [vmem:[#allocation2 + $0xc8] sm:$0xff] %v638
          %726 = vst [vmem:[#allocation2 + $0xd0] sm:$0xff] %v667
          %727 = vst [vmem:[#allocation2 + $0xd8] sm:$0xff] %v696
          %728 = vst [vmem:[#allocation2 + $0xe0] sm:$0xff] %v611
          %729 = vst [vmem:[#allocation2 + $0xe8] sm:$0xff] %v640
          %730 = vst [vmem:[#allocation2 + $0xf0] sm:$0xff] %v669
          %731 = vst [vmem:[#allocation2 + $0xf8] sm:$0xff] %v698
        $region60: #{tpu_custom_call.1} parent=35 // pred_fallthru
          _
        %p732 = scmp.ne.s32.totalorder %s29, 0
        // Predicated region
        $region61: #{tpu_custom_call.1} parent=35 // pred_check
          %p733 = pneg %p732
        $region62: #{tpu_custom_call.1} parent=35 // pred_check_branch
          %735 = sbr.rel (%p733) target = $region64
        $region63: #{tpu_custom_call.1} parent=35 // pred_region
          %s736 = scalar_lea.vmem [#allocation13], %s345
          %v737 = vld [vmem:[%s736] sm:$0xff]
          %v738 = vld [vmem:[%s736 + $0x8] sm:$0xff]
          %v739 = vld [vmem:[%s736 + $0x10] sm:$0xff]
          %v740 = vld [vmem:[%s736 + $0x18] sm:$0xff]
          %v741 = vld [vmem:[%s736 + $0x20] sm:$0xff]
          %v742 = vld [vmem:[%s736 + $0x28] sm:$0xff]
          %v743 = vld [vmem:[%s736 + $0x30] sm:$0xff]
          %v744 = vld [vmem:[%s736 + $0x38] sm:$0xff]
          %v745 = vpack.c.bf16 %v738, %v737
          %v746 = vpack.c.bf16 %v740, %v739
          %v747 = vpack.c.bf16 %v742, %v741
          %v748 = vpack.c.bf16 %v744, %v743
          %v749 = vld [vmem:[%s285] sm:$0xff]
          %v750 = vld [vmem:[%s285 + $0x8] sm:$0xff]
          %v751 = vld [vmem:[%s285 + $0x10] sm:$0xff]
          %v752 = vld [vmem:[%s285 + $0x18] sm:$0xff]
          %v753 = vld [vmem:[%s285 + $0x20] sm:$0xff]
          %v754 = vld [vmem:[%s285 + $0x28] sm:$0xff]
          %v755 = vld [vmem:[%s285 + $0x30] sm:$0xff]
          %v756 = vld [vmem:[%s285 + $0x38] sm:$0xff]
          %v757 = vld [vmem:[%s285 + $0x40] sm:$0xff]
          %v758 = vld [vmem:[%s285 + $0x48] sm:$0xff]
          %v759 = vld [vmem:[%s285 + $0x50] sm:$0xff]
          %v760 = vld [vmem:[%s285 + $0x58] sm:$0xff]
          %v761 = vld [vmem:[%s285 + $0x60] sm:$0xff]
          %v762 = vld [vmem:[%s285 + $0x68] sm:$0xff]
          %v763 = vld [vmem:[%s285 + $0x70] sm:$0xff]
          %v764 = vld [vmem:[%s285 + $0x78] sm:$0xff]
          %v765 = vld [vmem:[%s285 + $0x80] sm:$0xff]
          %v766 = vld [vmem:[%s285 + $0x88] sm:$0xff]
          %v767 = vld [vmem:[%s285 + $0x90] sm:$0xff]
          %v768 = vld [vmem:[%s285 + $0x98] sm:$0xff]
          %v769 = vld [vmem:[%s285 + $0xa0] sm:$0xff]
          %v770 = vld [vmem:[%s285 + $0xa8] sm:$0xff]
          %v771 = vld [vmem:[%s285 + $0xb0] sm:$0xff]
          %v772 = vld [vmem:[%s285 + $0xb8] sm:$0xff]
          %v773 = vld [vmem:[%s285 + $0xc0] sm:$0xff]
          %v774 = vld [vmem:[%s285 + $0xc8] sm:$0xff]
          %v775 = vld [vmem:[%s285 + $0xd0] sm:$0xff]
          %v776 = vld [vmem:[%s285 + $0xd8] sm:$0xff]
          %v777 = vld [vmem:[%s285 + $0xe0] sm:$0xff]
          %v778 = vld [vmem:[%s285 + $0xe8] sm:$0xff]
          %v779 = vld [vmem:[%s285 + $0xf0] sm:$0xff]
          %v780 = vld [vmem:[%s285 + $0xf8] sm:$0xff]
          %v782 = vperm.slane %v346, 0
          %v783 = vperm.slane %v346, 1
          %v784 = vperm.slane %v346, 2
          %v785 = vperm.slane %v346, 3
          %v822 = vunpack.c.l.b16 %v749
          %v823 = vunpack.c.h.b16 %v749
          %v824 = vunpack.c.l.b16 %v750
          %v825 = vunpack.c.h.b16 %v750
          %v826 = vunpack.c.l.b16 %v751
          %v827 = vunpack.c.h.b16 %v751
          %v828 = vunpack.c.l.b16 %v752
          %v829 = vunpack.c.h.b16 %v752
          %v830 = vunpack.c.l.b16 %v753
          %v831 = vunpack.c.h.b16 %v753
          %v832 = vunpack.c.l.b16 %v754
          %v833 = vunpack.c.h.b16 %v754
          %v834 = vunpack.c.l.b16 %v755
          %v835 = vunpack.c.h.b16 %v755
          %v836 = vunpack.c.l.b16 %v756
          %v837 = vunpack.c.h.b16 %v756
          %v838 = vunpack.c.l.b16 %v757
          %v839 = vunpack.c.h.b16 %v757
          %v840 = vunpack.c.l.b16 %v758
          %v841 = vunpack.c.h.b16 %v758
          %v842 = vunpack.c.l.b16 %v759
          %v843 = vunpack.c.h.b16 %v759
          %v844 = vunpack.c.l.b16 %v760
          %v845 = vunpack.c.h.b16 %v760
          %v846 = vunpack.c.l.b16 %v761
          %v847 = vunpack.c.h.b16 %v761
          %v848 = vunpack.c.l.b16 %v762
          %v849 = vunpack.c.h.b16 %v762
          %v850 = vunpack.c.l.b16 %v763
          %v851 = vunpack.c.h.b16 %v763
          %v852 = vunpack.c.l.b16 %v764
          %v853 = vunpack.c.h.b16 %v764
          %v854 = vunpack.c.l.b16 %v765
          %v855 = vunpack.c.h.b16 %v765
          %v856 = vunpack.c.l.b16 %v766
          %v857 = vunpack.c.h.b16 %v766
          %v858 = vunpack.c.l.b16 %v767
          %v859 = vunpack.c.h.b16 %v767
          %v860 = vunpack.c.l.b16 %v768
          %v861 = vunpack.c.h.b16 %v768
          %v862 = vunpack.c.l.b16 %v769
          %v863 = vunpack.c.h.b16 %v769
          %v864 = vunpack.c.l.b16 %v770
          %v865 = vunpack.c.h.b16 %v770
          %v866 = vunpack.c.l.b16 %v771
          %v867 = vunpack.c.h.b16 %v771
          %v868 = vunpack.c.l.b16 %v772
          %v869 = vunpack.c.h.b16 %v772
          %v870 = vunpack.c.l.b16 %v773
          %v871 = vunpack.c.h.b16 %v773
          %v872 = vunpack.c.l.b16 %v774
          %v873 = vunpack.c.h.b16 %v774
          %v874 = vunpack.c.l.b16 %v775
          %v875 = vunpack.c.h.b16 %v775
          %v876 = vunpack.c.l.b16 %v776
          %v877 = vunpack.c.h.b16 %v776
          %v878 = vunpack.c.l.b16 %v777
          %v879 = vunpack.c.h.b16 %v777
          %v880 = vunpack.c.l.b16 %v778
          %v881 = vunpack.c.h.b16 %v778
          %v882 = vunpack.c.l.b16 %v779
          %v883 = vunpack.c.h.b16 %v779
          %v884 = vunpack.c.l.b16 %v780
          %v885 = vunpack.c.h.b16 %v780
          %v886 = vpack.c.b16 %v826, %v822
          %v887 = vpack.c.b16 %v827, %v823
          %v888 = vpack.c.b16 %v828, %v824
          %v889 = vpack.c.b16 %v829, %v825
          %v890 = vpack.c.b16 %v834, %v830
          %v891 = vpack.c.b16 %v835, %v831
          %v892 = vpack.c.b16 %v836, %v832
          %v893 = vpack.c.b16 %v837, %v833
          %v894 = vpack.c.b16 %v842, %v838
          %v895 = vpack.c.b16 %v843, %v839
          %v896 = vpack.c.b16 %v844, %v840
          %v897 = vpack.c.b16 %v845, %v841
          %v898 = vpack.c.b16 %v850, %v846
          %v899 = vpack.c.b16 %v851, %v847
          %v900 = vpack.c.b16 %v852, %v848
          %v901 = vpack.c.b16 %v853, %v849
          %v902 = vpack.c.b16 %v858, %v854
          %v903 = vpack.c.b16 %v859, %v855
          %v904 = vpack.c.b16 %v860, %v856
          %v905 = vpack.c.b16 %v861, %v857
          %v906 = vpack.c.b16 %v866, %v862
          %v907 = vpack.c.b16 %v867, %v863
          %v908 = vpack.c.b16 %v868, %v864
          %v909 = vpack.c.b16 %v869, %v865
          %v910 = vpack.c.b16 %v874, %v870
          %v911 = vpack.c.b16 %v875, %v871
          %v912 = vpack.c.b16 %v876, %v872
          %v913 = vpack.c.b16 %v877, %v873
          %v914 = vpack.c.b16 %v882, %v878
          %v915 = vpack.c.b16 %v883, %v879
          %v916 = vpack.c.b16 %v884, %v880
          %v917 = vpack.c.b16 %v885, %v881
          %950 = vmatpush.bf16.msra.mxu0 %v914
          %951 = vmatpush.bf16.msra.mxu0 %v910
          %952 = vmatpush.bf16.msra.mxu0 %v906
          %953 = vmatpush.bf16.msra.mxu0 %v902
          %954 = vmatpush.bf16.msra.mxu0 %v898
          %955 = vmatpush.bf16.msra.mxu0 %v894
          %956 = vmatpush.bf16.msra.mxu0 %v890
          %957 = vmatpush.bf16.msra.mxu0 %v886
          %958 = vmatmul.bf16.gmra.mxu0 %v745
          %v959 = vpop.f32.mrf.mxu0
          %v960 = vadd.f32 %v782, %v959
          %v961 = vpop.f32.mrf.mxu0
          %v962 = vadd.f32 %v782, %v961
          %963 = vmatmul.bf16.gmra.mxu0 %v746
          %v964 = vpop.f32.mrf.mxu0
          %v965 = vadd.f32 %v782, %v964
          %v966 = vpop.f32.mrf.mxu0
          %v967 = vadd.f32 %v782, %v966
          %968 = vmatmul.bf16.gmra.mxu0 %v747
          %v969 = vpop.f32.mrf.mxu0
          %v970 = vadd.f32 %v782, %v969
          %v971 = vpop.f32.mrf.mxu0
          %v972 = vadd.f32 %v782, %v971
          %973 = vmatmul.bf16.gmra.mxu0 %v748
          %v974 = vpop.f32.mrf.mxu0
          %v975 = vadd.f32 %v782, %v974
          %v976 = vpop.f32.mrf.mxu0
          %v977 = vadd.f32 %v782, %v976
          %978 = vdwg.mxu0
          %979 = vmatpush.bf16.msra.mxu0 %v915
          %980 = vmatpush.bf16.msra.mxu0 %v911
          %981 = vmatpush.bf16.msra.mxu0 %v907
          %982 = vmatpush.bf16.msra.mxu0 %v903
          %983 = vmatpush.bf16.msra.mxu0 %v899
          %984 = vmatpush.bf16.msra.mxu0 %v895
          %985 = vmatpush.bf16.msra.mxu0 %v891
          %986 = vmatpush.bf16.msra.mxu0 %v887
          %987 = vmatmul.bf16.gmra.mxu0 %v745
          %v988 = vpop.f32.mrf.mxu0
          %v989 = vadd.f32 %v783, %v988
          %v990 = vpop.f32.mrf.mxu0
          %v991 = vadd.f32 %v783, %v990
          %992 = vmatmul.bf16.gmra.mxu0 %v746
          %v993 = vpop.f32.mrf.mxu0
          %v994 = vadd.f32 %v783, %v993
          %v995 = vpop.f32.mrf.mxu0
          %v996 = vadd.f32 %v783, %v995
          %997 = vmatmul.bf16.gmra.mxu0 %v747
          %v998 = vpop.f32.mrf.mxu0
          %v999 = vadd.f32 %v783, %v998
          %v1000 = vpop.f32.mrf.mxu0
          %v1001 = vadd.f32 %v783, %v1000
          %1002 = vmatmul.bf16.gmra.mxu0 %v748
          %v1003 = vpop.f32.mrf.mxu0
          %v1004 = vadd.f32 %v783, %v1003
          %v1005 = vpop.f32.mrf.mxu0
          %v1006 = vadd.f32 %v783, %v1005
          %1007 = vdwg.mxu0
          %1008 = vmatpush.bf16.msra.mxu0 %v916
          %1009 = vmatpush.bf16.msra.mxu0 %v912
          %1010 = vmatpush.bf16.msra.mxu0 %v908
          %1011 = vmatpush.bf16.msra.mxu0 %v904
          %1012 = vmatpush.bf16.msra.mxu0 %v900
          %1013 = vmatpush.bf16.msra.mxu0 %v896
          %1014 = vmatpush.bf16.msra.mxu0 %v892
          %1015 = vmatpush.bf16.msra.mxu0 %v888
          %1016 = vmatmul.bf16.gmra.mxu0 %v745
          %v1017 = vpop.f32.mrf.mxu0
          %v1018 = vadd.f32 %v784, %v1017
          %v1019 = vpop.f32.mrf.mxu0
          %v1020 = vadd.f32 %v784, %v1019
          %1021 = vmatmul.bf16.gmra.mxu0 %v746
          %v1022 = vpop.f32.mrf.mxu0
          %v1023 = vadd.f32 %v784, %v1022
          %v1024 = vpop.f32.mrf.mxu0
          %v1025 = vadd.f32 %v784, %v1024
          %1026 = vmatmul.bf16.gmra.mxu0 %v747
          %v1027 = vpop.f32.mrf.mxu0
          %v1028 = vadd.f32 %v784, %v1027
          %v1029 = vpop.f32.mrf.mxu0
          %v1030 = vadd.f32 %v784, %v1029
          %1031 = vmatmul.bf16.gmra.mxu0 %v748
          %v1032 = vpop.f32.mrf.mxu0
          %v1033 = vadd.f32 %v784, %v1032
          %v1034 = vpop.f32.mrf.mxu0
          %v1035 = vadd.f32 %v784, %v1034
          %1036 = vdwg.mxu0
          %1037 = vmatpush.bf16.msra.mxu0 %v917
          %1038 = vmatpush.bf16.msra.mxu0 %v913
          %1039 = vmatpush.bf16.msra.mxu0 %v909
          %1040 = vmatpush.bf16.msra.mxu0 %v905
          %1041 = vmatpush.bf16.msra.mxu0 %v901
          %1042 = vmatpush.bf16.msra.mxu0 %v897
          %1043 = vmatpush.bf16.msra.mxu0 %v893
          %1044 = vmatpush.bf16.msra.mxu0 %v889
          %1045 = vmatmul.bf16.gmra.mxu0 %v745
          %v1046 = vpop.f32.mrf.mxu0
          %v1047 = vadd.f32 %v785, %v1046
          %v1048 = vpop.f32.mrf.mxu0
          %v1049 = vadd.f32 %v785, %v1048
          %1050 = vmatmul.bf16.gmra.mxu0 %v746
          %v1051 = vpop.f32.mrf.mxu0
          %v1052 = vadd.f32 %v785, %v1051
          %v1053 = vpop.f32.mrf.mxu0
          %v1054 = vadd.f32 %v785, %v1053
          %1055 = vmatmul.bf16.gmra.mxu0 %v747
          %v1056 = vpop.f32.mrf.mxu0
          %v1057 = vadd.f32 %v785, %v1056
          %v1058 = vpop.f32.mrf.mxu0
          %v1059 = vadd.f32 %v785, %v1058
          %1060 = vmatmul.bf16.gmra.mxu0 %v748
          %v1061 = vpop.f32.mrf.mxu0
          %v1062 = vadd.f32 %v785, %v1061
          %v1063 = vpop.f32.mrf.mxu0
          %v1064 = vadd.f32 %v785, %v1063
          %1065 = vdwg.mxu0
          %1066 = vst [vmem:[#allocation2] sm:$0xff] %v960
          %1067 = vst [vmem:[#allocation2 + $0x8] sm:$0xff] %v989
          %1068 = vst [vmem:[#allocation2 + $0x10] sm:$0xff] %v1018
          %1069 = vst [vmem:[#allocation2 + $0x18] sm:$0xff] %v1047
          %1070 = vst [vmem:[#allocation2 + $0x20] sm:$0xff] %v962
          %1071 = vst [vmem:[#allocation2 + $0x28] sm:$0xff] %v991
          %1072 = vst [vmem:[#allocation2 + $0x30] sm:$0xff] %v1020
          %1073 = vst [vmem:[#allocation2 + $0x38] sm:$0xff] %v1049
          %1074 = vst [vmem:[#allocation2 + $0x40] sm:$0xff] %v965
          %1075 = vst [vmem:[#allocation2 + $0x48] sm:$0xff] %v994
          %1076 = vst [vmem:[#allocation2 + $0x50] sm:$0xff] %v1023
          %1077 = vst [vmem:[#allocation2 + $0x58] sm:$0xff] %v1052
          %1078 = vst [vmem:[#allocation2 + $0x60] sm:$0xff] %v967
          %1079 = vst [vmem:[#allocation2 + $0x68] sm:$0xff] %v996
          %1080 = vst [vmem:[#allocation2 + $0x70] sm:$0xff] %v1025
          %1081 = vst [vmem:[#allocation2 + $0x78] sm:$0xff] %v1054
          %1082 = vst [vmem:[#allocation2 + $0x80] sm:$0xff] %v970
          %1083 = vst [vmem:[#allocation2 + $0x88] sm:$0xff] %v999
          %1084 = vst [vmem:[#allocation2 + $0x90] sm:$0xff] %v1028
          %1085 = vst [vmem:[#allocation2 + $0x98] sm:$0xff] %v1057
          %1086 = vst [vmem:[#allocation2 + $0xa0] sm:$0xff] %v972
          %1087 = vst [vmem:[#allocation2 + $0xa8] sm:$0xff] %v1001
          %1088 = vst [vmem:[#allocation2 + $0xb0] sm:$0xff] %v1030
          %1089 = vst [vmem:[#allocation2 + $0xb8] sm:$0xff] %v1059
          %1090 = vst [vmem:[#allocation2 + $0xc0] sm:$0xff] %v975
          %1091 = vst [vmem:[#allocation2 + $0xc8] sm:$0xff] %v1004
          %1092 = vst [vmem:[#allocation2 + $0xd0] sm:$0xff] %v1033
          %1093 = vst [vmem:[#allocation2 + $0xd8] sm:$0xff] %v1062
          %1094 = vst [vmem:[#allocation2 + $0xe0] sm:$0xff] %v977
          %1095 = vst [vmem:[#allocation2 + $0xe8] sm:$0xff] %v1006
          %1096 = vst [vmem:[#allocation2 + $0xf0] sm:$0xff] %v1035
          %1097 = vst [vmem:[#allocation2 + $0xf8] sm:$0xff] %v1064
        $region64: #{tpu_custom_call.1} parent=35 // pred_fallthru
          _
        %v1098 = vld [vmem:[%s295] sm:$0xff]
        %v1099 = vld [vmem:[%s295 + $0x8] sm:$0xff]
        %v1100 = vld [vmem:[%s295 + $0x10] sm:$0xff]
        %v1101 = vld [vmem:[%s295 + $0x18] sm:$0xff]
        %v1102 = vld [vmem:[%s295 + $0x20] sm:$0xff]
        %v1103 = vld [vmem:[%s295 + $0x28] sm:$0xff]
        %v1104 = vld [vmem:[%s295 + $0x30] sm:$0xff]
        %v1105 = vld [vmem:[%s295 + $0x38] sm:$0xff]
        %v1106 = vld [vmem:[%s295 + $0x40] sm:$0xff]
        %v1107 = vld [vmem:[%s295 + $0x48] sm:$0xff]
        %v1108 = vld [vmem:[%s295 + $0x50] sm:$0xff]
        %v1109 = vld [vmem:[%s295 + $0x58] sm:$0xff]
        %v1110 = vld [vmem:[%s295 + $0x60] sm:$0xff]
        %v1111 = vld [vmem:[%s295 + $0x68] sm:$0xff]
        %v1112 = vld [vmem:[%s295 + $0x70] sm:$0xff]
        %v1113 = vld [vmem:[%s295 + $0x78] sm:$0xff]
        %v1114 = vld [vmem:[%s295 + $0x80] sm:$0xff]
        %v1115 = vld [vmem:[%s295 + $0x88] sm:$0xff]
        %v1116 = vld [vmem:[%s295 + $0x90] sm:$0xff]
        %v1117 = vld [vmem:[%s295 + $0x98] sm:$0xff]
        %v1118 = vld [vmem:[%s295 + $0xa0] sm:$0xff]
        %v1119 = vld [vmem:[%s295 + $0xa8] sm:$0xff]
        %v1120 = vld [vmem:[%s295 + $0xb0] sm:$0xff]
        %v1121 = vld [vmem:[%s295 + $0xb8] sm:$0xff]
        %v1122 = vld [vmem:[%s295 + $0xc0] sm:$0xff]
        %v1123 = vld [vmem:[%s295 + $0xc8] sm:$0xff]
        %v1124 = vld [vmem:[%s295 + $0xd0] sm:$0xff]
        %v1125 = vld [vmem:[%s295 + $0xd8] sm:$0xff]
        %v1126 = vld [vmem:[%s295 + $0xe0] sm:$0xff]
        %v1127 = vld [vmem:[%s295 + $0xe8] sm:$0xff]
        %v1128 = vld [vmem:[%s295 + $0xf0] sm:$0xff]
        %v1129 = vld [vmem:[%s295 + $0xf8] sm:$0xff]
        %v1130 = vld [vmem:[#allocation3] sm:$0xff]
        %v1131 = vld [vmem:[#allocation4] sm:$0xff]
        %s1132 = smul.u32 0, 4
        %s1133 = smul.addr %s1132, 8
        %s1134 = scalar_lea.vmem [#allocation2], %s1133
        %v1135 = vld [vmem:[%s1134] sm:$0xff]
        %v1136 = vld [vmem:[%s1134 + $0x8] sm:$0xff]
        %v1137 = vld [vmem:[%s1134 + $0x10] sm:$0xff]
        %v1138 = vld [vmem:[%s1134 + $0x18] sm:$0xff]
        %v1139 = vpack.c.bf16 %v1130, %v1130
        %v1172 = vunpack.c.l.b16 %v1098
        %v1173 = vunpack.c.h.b16 %v1098
        %v1174 = vunpack.c.l.b16 %v1099
        %v1175 = vunpack.c.h.b16 %v1099
        %v1176 = vunpack.c.l.b16 %v1100
        %v1177 = vunpack.c.h.b16 %v1100
        %v1178 = vunpack.c.l.b16 %v1101
        %v1179 = vunpack.c.h.b16 %v1101
        %v1180 = vunpack.c.l.b16 %v1102
        %v1181 = vunpack.c.h.b16 %v1102
        %v1182 = vunpack.c.l.b16 %v1103
        %v1183 = vunpack.c.h.b16 %v1103
        %v1184 = vunpack.c.l.b16 %v1104
        %v1185 = vunpack.c.h.b16 %v1104
        %v1186 = vunpack.c.l.b16 %v1105
        %v1187 = vunpack.c.h.b16 %v1105
        %v1188 = vunpack.c.l.b16 %v1106
        %v1189 = vunpack.c.h.b16 %v1106
        %v1190 = vunpack.c.l.b16 %v1107
        %v1191 = vunpack.c.h.b16 %v1107
        %v1192 = vunpack.c.l.b16 %v1108
        %v1193 = vunpack.c.h.b16 %v1108
        %v1194 = vunpack.c.l.b16 %v1109
        %v1195 = vunpack.c.h.b16 %v1109
        %v1196 = vunpack.c.l.b16 %v1110
        %v1197 = vunpack.c.h.b16 %v1110
        %v1198 = vunpack.c.l.b16 %v1111
        %v1199 = vunpack.c.h.b16 %v1111
        %v1200 = vunpack.c.l.b16 %v1112
        %v1201 = vunpack.c.h.b16 %v1112
        %v1202 = vunpack.c.l.b16 %v1113
        %v1203 = vunpack.c.h.b16 %v1113
        %v1204 = vunpack.c.l.b16 %v1114
        %v1205 = vunpack.c.h.b16 %v1114
        %v1206 = vunpack.c.l.b16 %v1115
        %v1207 = vunpack.c.h.b16 %v1115
        %v1208 = vunpack.c.l.b16 %v1116
        %v1209 = vunpack.c.h.b16 %v1116
        %v1210 = vunpack.c.l.b16 %v1117
        %v1211 = vunpack.c.h.b16 %v1117
        %v1212 = vunpack.c.l.b16 %v1118
        %v1213 = vunpack.c.h.b16 %v1118
        %v1214 = vunpack.c.l.b16 %v1119
        %v1215 = vunpack.c.h.b16 %v1119
        %v1216 = vunpack.c.l.b16 %v1120
        %v1217 = vunpack.c.h.b16 %v1120
        %v1218 = vunpack.c.l.b16 %v1121
        %v1219 = vunpack.c.h.b16 %v1121
        %v1220 = vunpack.c.l.b16 %v1122
        %v1221 = vunpack.c.h.b16 %v1122
        %v1222 = vunpack.c.l.b16 %v1123
        %v1223 = vunpack.c.h.b16 %v1123
        %v1224 = vunpack.c.l.b16 %v1124
        %v1225 = vunpack.c.h.b16 %v1124
        %v1226 = vunpack.c.l.b16 %v1125
        %v1227 = vunpack.c.h.b16 %v1125
        %v1228 = vunpack.c.l.b16 %v1126
        %v1229 = vunpack.c.h.b16 %v1126
        %v1230 = vunpack.c.l.b16 %v1127
        %v1231 = vunpack.c.h.b16 %v1127
        %v1232 = vunpack.c.l.b16 %v1128
        %v1233 = vunpack.c.h.b16 %v1128
        %v1234 = vunpack.c.l.b16 %v1129
        %v1235 = vunpack.c.h.b16 %v1129
        %v1236 = vpack.c.b16 %v1176, %v1172
        %v1237 = vpack.c.b16 %v1177, %v1173
        %v1238 = vpack.c.b16 %v1178, %v1174
        %v1239 = vpack.c.b16 %v1179, %v1175
        %v1240 = vpack.c.b16 %v1184, %v1180
        %v1241 = vpack.c.b16 %v1185, %v1181
        %v1242 = vpack.c.b16 %v1186, %v1182
        %v1243 = vpack.c.b16 %v1187, %v1183
        %v1244 = vpack.c.b16 %v1192, %v1188
        %v1245 = vpack.c.b16 %v1193, %v1189
        %v1246 = vpack.c.b16 %v1194, %v1190
        %v1247 = vpack.c.b16 %v1195, %v1191
        %v1248 = vpack.c.b16 %v1200, %v1196
        %v1249 = vpack.c.b16 %v1201, %v1197
        %v1250 = vpack.c.b16 %v1202, %v1198
        %v1251 = vpack.c.b16 %v1203, %v1199
        %v1252 = vpack.c.b16 %v1208, %v1204
        %v1253 = vpack.c.b16 %v1209, %v1205
        %v1254 = vpack.c.b16 %v1210, %v1206
        %v1255 = vpack.c.b16 %v1211, %v1207
        %v1256 = vpack.c.b16 %v1216, %v1212
        %v1257 = vpack.c.b16 %v1217, %v1213
        %v1258 = vpack.c.b16 %v1218, %v1214
        %v1259 = vpack.c.b16 %v1219, %v1215
        %v1260 = vpack.c.b16 %v1224, %v1220
        %v1261 = vpack.c.b16 %v1225, %v1221
        %v1262 = vpack.c.b16 %v1226, %v1222
        %v1263 = vpack.c.b16 %v1227, %v1223
        %v1264 = vpack.c.b16 %v1232, %v1228
        %v1265 = vpack.c.b16 %v1233, %v1229
        %v1266 = vpack.c.b16 %v1234, %v1230
        %v1267 = vpack.c.b16 %v1235, %v1231
        %1300 = vmatpush.bf16.msra.mxu0 %v1264
        %1301 = vmatpush.bf16.msra.mxu0 %v1260
        %1302 = vmatpush.bf16.msra.mxu0 %v1256
        %1303 = vmatpush.bf16.msra.mxu0 %v1252
        %1304 = vmatpush.bf16.msra.mxu0 %v1248
        %1305 = vmatpush.bf16.msra.mxu0 %v1244
        %1306 = vmatpush.bf16.msra.mxu0 %v1240
        %1307 = vmatpush.bf16.msra.mxu0 %v1236
        %1308 = vmatmul.bf16.gmra.mxu0 %v1139
        %v1309 = vpop.f32.mrf.mxu0
        %v1310 = vadd.f32 0.0, %v1309
        %v1311 = vpop.f32.mrf.mxu0
        %1312 = vdwg.mxu0
        %1313 = vmatpush.bf16.msra.mxu0 %v1265
        %1314 = vmatpush.bf16.msra.mxu0 %v1261
        %1315 = vmatpush.bf16.msra.mxu0 %v1257
        %1316 = vmatpush.bf16.msra.mxu0 %v1253
        %1317 = vmatpush.bf16.msra.mxu0 %v1249
        %1318 = vmatpush.bf16.msra.mxu0 %v1245
        %1319 = vmatpush.bf16.msra.mxu0 %v1241
        %1320 = vmatpush.bf16.msra.mxu0 %v1237
        %1321 = vmatmul.bf16.gmra.mxu0 %v1139
        %v1322 = vpop.f32.mrf.mxu0
        %v1323 = vadd.f32 0.0, %v1322
        %v1324 = vpop.f32.mrf.mxu0
        %1325 = vdwg.mxu0
        %1326 = vmatpush.bf16.msra.mxu0 %v1266
        %1327 = vmatpush.bf16.msra.mxu0 %v1262
        %1328 = vmatpush.bf16.msra.mxu0 %v1258
        %1329 = vmatpush.bf16.msra.mxu0 %v1254
        %1330 = vmatpush.bf16.msra.mxu0 %v1250
        %1331 = vmatpush.bf16.msra.mxu0 %v1246
        %1332 = vmatpush.bf16.msra.mxu0 %v1242
        %1333 = vmatpush.bf16.msra.mxu0 %v1238
        %1334 = vmatmul.bf16.gmra.mxu0 %v1139
        %v1335 = vpop.f32.mrf.mxu0
        %v1336 = vadd.f32 0.0, %v1335
        %v1337 = vpop.f32.mrf.mxu0
        %1338 = vdwg.mxu0
        %1339 = vmatpush.bf16.msra.mxu0 %v1267
        %1340 = vmatpush.bf16.msra.mxu0 %v1263
        %1341 = vmatpush.bf16.msra.mxu0 %v1259
        %1342 = vmatpush.bf16.msra.mxu0 %v1255
        %1343 = vmatpush.bf16.msra.mxu0 %v1251
        %1344 = vmatpush.bf16.msra.mxu0 %v1247
        %1345 = vmatpush.bf16.msra.mxu0 %v1243
        %1346 = vmatpush.bf16.msra.mxu0 %v1239
        %1347 = vmatmul.bf16.gmra.mxu0 %v1139
        %v1348 = vpop.f32.mrf.mxu0
        %v1349 = vadd.f32 0.0, %v1348
        %v1350 = vpop.f32.mrf.mxu0
        %1351 = vdwg.mxu0
        %v1352 = vadd.f32 %v1135, %v1310
        %v1353 = vadd.f32 %v1136, %v1323
        %v1354 = vadd.f32 %v1137, %v1336
        %v1355 = vadd.f32 %v1138, %v1349
        %v1356 = vxor.u32 %v1352, 2147483648
        %v1357 = vmul.f32 %v1356, 1.442695
        %v1358 = vpow.pop %v1357
        %v1359 = vadd.f32 %v1358, 1.0
        %v1360 = vrcp.pop %v1359
        %v1361 = vmul.f32 %v1359, %v1360
        %v1362 = vsub.f32 1.0, %v1361
        %v1363 = vmul.f32 %v1360, %v1362
        %v1364 = vadd.f32 %v1360, %v1363
        %vm1365 = vweird.f32 %v1359
        %vm1366 = vweird.f32 %v1360
        %vm1367 = vmor %vm1365, %vm1366
        %v1368 = vsel %vm1367, %v1360, %v1364
        %v1369 = vand.u32 2147483647, %v1359
        %vm1370 = vcmp.eq.f32.partialorder %v1369, 8.507059e+37
        %v1371 = vand.u32 %v1359, 2147483648
        %v1372 = vor.u32 1.1754944e-38, %v1371
        %v1373 = vsel %vm1370, %v1372, %v1368
        %v1374 = vmul.f32 1.0, %v1373
        %v1375 = vxor.u32 %v1353, 2147483648
        %v1376 = vmul.f32 %v1375, 1.442695
        %v1377 = vpow.pop %v1376
        %v1378 = vadd.f32 %v1377, 1.0
        %v1379 = vrcp.pop %v1378
        %v1380 = vmul.f32 %v1378, %v1379
        %v1381 = vsub.f32 1.0, %v1380
        %v1382 = vmul.f32 %v1379, %v1381
        %v1383 = vadd.f32 %v1379, %v1382
        %vm1384 = vweird.f32 %v1378
        %vm1385 = vweird.f32 %v1379
        %vm1386 = vmor %vm1384, %vm1385
        %v1387 = vsel %vm1386, %v1379, %v1383
        %v1388 = vand.u32 2147483647, %v1378
        %vm1389 = vcmp.eq.f32.partialorder %v1388, 8.507059e+37
        %v1390 = vand.u32 %v1378, 2147483648
        %v1391 = vor.u32 1.1754944e-38, %v1390
        %v1392 = vsel %vm1389, %v1391, %v1387
        %v1393 = vmul.f32 1.0, %v1392
        %v1394 = vtanh.pop %v1354
        %v1395 = vxor.u32 %v1355, 2147483648
        %v1396 = vmul.f32 %v1395, 1.442695
        %v1397 = vpow.pop %v1396
        %v1398 = vadd.f32 %v1397, 1.0
        %v1399 = vrcp.pop %v1398
        %v1400 = vmul.f32 %v1398, %v1399
        %v1401 = vsub.f32 1.0, %v1400
        %v1402 = vmul.f32 %v1399, %v1401
        %v1403 = vadd.f32 %v1399, %v1402
        %vm1404 = vweird.f32 %v1398
        %vm1405 = vweird.f32 %v1399
        %vm1406 = vmor %vm1404, %vm1405
        %v1407 = vsel %vm1406, %v1399, %v1403
        %v1408 = vand.u32 2147483647, %v1398
        %vm1409 = vcmp.eq.f32.partialorder %v1408, 8.507059e+37
        %v1410 = vand.u32 %v1398, 2147483648
        %v1411 = vor.u32 1.1754944e-38, %v1410
        %v1412 = vsel %vm1409, %v1411, %v1407
        %v1413 = vmul.f32 1.0, %v1412
        %v1414 = vmul.f32 %v1393, %v1131
        %v1415 = vmul.f32 %v1374, %v1394
        %v1416 = vadd.f32 %v1414, %v1415
        %v1417 = vtanh.pop %v1416
        %v1418 = vmul.f32 %v1413, %v1417
        %s1419 = sadd.s32 %s345, 0
        %s1420 = scalar_lea.vmem [#allocation13], %s1419
        %1421 = vst [vmem:[%s1420] sm:$0xff] %v1418
        %s1422 = smul.u32 1, 4
        %s1423 = smul.addr %s1422, 8
        %s1424 = scalar_lea.vmem [#allocation2], %s1423
        %v1425 = vld [vmem:[%s1424] sm:$0xff]
        %v1426 = vld [vmem:[%s1424 + $0x8] sm:$0xff]
        %v1427 = vld [vmem:[%s1424 + $0x10] sm:$0xff]
        %v1428 = vld [vmem:[%s1424 + $0x18] sm:$0xff]
        %v1429 = vpack.c.bf16 %v1418, %v1418
        %1430 = vmatpush.bf16.msra.mxu0 %v1264
        %1431 = vmatpush.bf16.msra.mxu0 %v1260
        %1432 = vmatpush.bf16.msra.mxu0 %v1256
        %1433 = vmatpush.bf16.msra.mxu0 %v1252
        %1434 = vmatpush.bf16.msra.mxu0 %v1248
        %1435 = vmatpush.bf16.msra.mxu0 %v1244
        %1436 = vmatpush.bf16.msra.mxu0 %v1240
        %1437 = vmatpush.bf16.msra.mxu0 %v1236
        %1438 = vmatmul.bf16.gmra.mxu0 %v1429
        %v1439 = vpop.f32.mrf.mxu0
        %v1440 = vadd.f32 0.0, %v1439
        %v1441 = vpop.f32.mrf.mxu0
        %1442 = vdwg.mxu0
        %1443 = vmatpush.bf16.msra.mxu0 %v1265
        %1444 = vmatpush.bf16.msra.mxu0 %v1261
        %1445 = vmatpush.bf16.msra.mxu0 %v1257
        %1446 = vmatpush.bf16.msra.mxu0 %v1253
        %1447 = vmatpush.bf16.msra.mxu0 %v1249
        %1448 = vmatpush.bf16.msra.mxu0 %v1245
        %1449 = vmatpush.bf16.msra.mxu0 %v1241
        %1450 = vmatpush.bf16.msra.mxu0 %v1237
        %1451 = vmatmul.bf16.gmra.mxu0 %v1429
        %v1452 = vpop.f32.mrf.mxu0
        %v1453 = vadd.f32 0.0, %v1452
        %v1454 = vpop.f32.mrf.mxu0
        %1455 = vdwg.mxu0
        %1456 = vmatpush.bf16.msra.mxu0 %v1266
        %1457 = vmatpush.bf16.msra.mxu0 %v1262
        %1458 = vmatpush.bf16.msra.mxu0 %v1258
        %1459 = vmatpush.bf16.msra.mxu0 %v1254
        %1460 = vmatpush.bf16.msra.mxu0 %v1250
        %1461 = vmatpush.bf16.msra.mxu0 %v1246
        %1462 = vmatpush.bf16.msra.mxu0 %v1242
        %1463 = vmatpush.bf16.msra.mxu0 %v1238
        %1464 = vmatmul.bf16.gmra.mxu0 %v1429
        %v1465 = vpop.f32.mrf.mxu0
        %v1466 = vadd.f32 0.0, %v1465
        %v1467 = vpop.f32.mrf.mxu0
        %1468 = vdwg.mxu0
        %1469 = vmatpush.bf16.msra.mxu0 %v1267
        %1470 = vmatpush.bf16.msra.mxu0 %v1263
        %1471 = vmatpush.bf16.msra.mxu0 %v1259
        %1472 = vmatpush.bf16.msra.mxu0 %v1255
        %1473 = vmatpush.bf16.msra.mxu0 %v1251
        %1474 = vmatpush.bf16.msra.mxu0 %v1247
        %1475 = vmatpush.bf16.msra.mxu0 %v1243
        %1476 = vmatpush.bf16.msra.mxu0 %v1239
        %1477 = vmatmul.bf16.gmra.mxu0 %v1429
        %v1478 = vpop.f32.mrf.mxu0
        %v1479 = vadd.f32 0.0, %v1478
        %v1480 = vpop.f32.mrf.mxu0
        %1481 = vdwg.mxu0
        %v1482 = vadd.f32 %v1425, %v1440
        %v1483 = vadd.f32 %v1426, %v1453
        %v1484 = vadd.f32 %v1427, %v1466
        %v1485 = vadd.f32 %v1428, %v1479
        %v1486 = vxor.u32 %v1482, 2147483648
        %v1487 = vmul.f32 %v1486, 1.442695
        %v1488 = vpow.pop %v1487
        %v1489 = vadd.f32 %v1488, 1.0
        %v1490 = vrcp.pop %v1489
        %v1491 = vmul.f32 %v1489, %v1490
        %v1492 = vsub.f32 1.0, %v1491
        %v1493 = vmul.f32 %v1490, %v1492
        %v1494 = vadd.f32 %v1490, %v1493
        %vm1495 = vweird.f32 %v1489
        %vm1496 = vweird.f32 %v1490
        %vm1497 = vmor %vm1495, %vm1496
        %v1498 = vsel %vm1497, %v1490, %v1494
        %v1499 = vand.u32 2147483647, %v1489
        %vm1500 = vcmp.eq.f32.partialorder %v1499, 8.507059e+37
        %v1501 = vand.u32 %v1489, 2147483648
        %v1502 = vor.u32 1.1754944e-38, %v1501
        %v1503 = vsel %vm1500, %v1502, %v1498
        %v1504 = vmul.f32 1.0, %v1503
        %v1505 = vxor.u32 %v1483, 2147483648
        %v1506 = vmul.f32 %v1505, 1.442695
        %v1507 = vpow.pop %v1506
        %v1508 = vadd.f32 %v1507, 1.0
        %v1509 = vrcp.pop %v1508
        %v1510 = vmul.f32 %v1508, %v1509
        %v1511 = vsub.f32 1.0, %v1510
        %v1512 = vmul.f32 %v1509, %v1511
        %v1513 = vadd.f32 %v1509, %v1512
        %vm1514 = vweird.f32 %v1508
        %vm1515 = vweird.f32 %v1509
        %vm1516 = vmor %vm1514, %vm1515
        %v1517 = vsel %vm1516, %v1509, %v1513
        %v1518 = vand.u32 2147483647, %v1508
        %vm1519 = vcmp.eq.f32.partialorder %v1518, 8.507059e+37
        %v1520 = vand.u32 %v1508, 2147483648
        %v1521 = vor.u32 1.1754944e-38, %v1520
        %v1522 = vsel %vm1519, %v1521, %v1517
        %v1523 = vmul.f32 1.0, %v1522
        %v1524 = vtanh.pop %v1484
        %v1525 = vxor.u32 %v1485, 2147483648
        %v1526 = vmul.f32 %v1525, 1.442695
        %v1527 = vpow.pop %v1526
        %v1528 = vadd.f32 %v1527, 1.0
        %v1529 = vrcp.pop %v1528
        %v1530 = vmul.f32 %v1528, %v1529
        %v1531 = vsub.f32 1.0, %v1530
        %v1532 = vmul.f32 %v1529, %v1531
        %v1533 = vadd.f32 %v1529, %v1532
        %vm1534 = vweird.f32 %v1528
        %vm1535 = vweird.f32 %v1529
        %vm1536 = vmor %vm1534, %vm1535
        %v1537 = vsel %vm1536, %v1529, %v1533
        %v1538 = vand.u32 2147483647, %v1528
        %vm1539 = vcmp.eq.f32.partialorder %v1538, 8.507059e+37
        %v1540 = vand.u32 %v1528, 2147483648
        %v1541 = vor.u32 1.1754944e-38, %v1540
        %v1542 = vsel %vm1539, %v1541, %v1537
        %v1543 = vmul.f32 1.0, %v1542
        %v1544 = vmul.f32 %v1523, %v1416
        %v1545 = vmul.f32 %v1504, %v1524
        %v1546 = vadd.f32 %v1544, %v1545
        %v1547 = vtanh.pop %v1546
        %v1548 = vmul.f32 %v1543, %v1547
        %s1549 = sadd.s32 %s345, 8
        %s1550 = scalar_lea.vmem [#allocation13], %s1549
        %1551 = vst [vmem:[%s1550] sm:$0xff] %v1548
        %s1552 = smul.u32 2, 4
        %s1553 = smul.addr %s1552, 8
        %s1554 = scalar_lea.vmem [#allocation2], %s1553
        %v1555 = vld [vmem:[%s1554] sm:$0xff]
        %v1556 = vld [vmem:[%s1554 + $0x8] sm:$0xff]
        %v1557 = vld [vmem:[%s1554 + $0x10] sm:$0xff]
        %v1558 = vld [vmem:[%s1554 + $0x18] sm:$0xff]
        %v1559 = vpack.c.bf16 %v1548, %v1548
        %1560 = vmatpush.bf16.msra.mxu0 %v1264
        %1561 = vmatpush.bf16.msra.mxu0 %v1260
        %1562 = vmatpush.bf16.msra.mxu0 %v1256
        %1563 = vmatpush.bf16.msra.mxu0 %v1252
        %1564 = vmatpush.bf16.msra.mxu0 %v1248
        %1565 = vmatpush.bf16.msra.mxu0 %v1244
        %1566 = vmatpush.bf16.msra.mxu0 %v1240
        %1567 = vmatpush.bf16.msra.mxu0 %v1236
        %1568 = vmatmul.bf16.gmra.mxu0 %v1559
        %v1569 = vpop.f32.mrf.mxu0
        %v1570 = vadd.f32 0.0, %v1569
        %v1571 = vpop.f32.mrf.mxu0
        %1572 = vdwg.mxu0
        %1573 = vmatpush.bf16.msra.mxu0 %v1265
        %1574 = vmatpush.bf16.msra.mxu0 %v1261
        %1575 = vmatpush.bf16.msra.mxu0 %v1257
        %1576 = vmatpush.bf16.msra.mxu0 %v1253
        %1577 = vmatpush.bf16.msra.mxu0 %v1249
        %1578 = vmatpush.bf16.msra.mxu0 %v1245
        %1579 = vmatpush.bf16.msra.mxu0 %v1241
        %1580 = vmatpush.bf16.msra.mxu0 %v1237
        %1581 = vmatmul.bf16.gmra.mxu0 %v1559
        %v1582 = vpop.f32.mrf.mxu0
        %v1583 = vadd.f32 0.0, %v1582
        %v1584 = vpop.f32.mrf.mxu0
        %1585 = vdwg.mxu0
        %1586 = vmatpush.bf16.msra.mxu0 %v1266
        %1587 = vmatpush.bf16.msra.mxu0 %v1262
        %1588 = vmatpush.bf16.msra.mxu0 %v1258
        %1589 = vmatpush.bf16.msra.mxu0 %v1254
        %1590 = vmatpush.bf16.msra.mxu0 %v1250
        %1591 = vmatpush.bf16.msra.mxu0 %v1246
        %1592 = vmatpush.bf16.msra.mxu0 %v1242
        %1593 = vmatpush.bf16.msra.mxu0 %v1238
        %1594 = vmatmul.bf16.gmra.mxu0 %v1559
        %v1595 = vpop.f32.mrf.mxu0
        %v1596 = vadd.f32 0.0, %v1595
        %v1597 = vpop.f32.mrf.mxu0
        %1598 = vdwg.mxu0
        %1599 = vmatpush.bf16.msra.mxu0 %v1267
        %1600 = vmatpush.bf16.msra.mxu0 %v1263
        %1601 = vmatpush.bf16.msra.mxu0 %v1259
        %1602 = vmatpush.bf16.msra.mxu0 %v1255
        %1603 = vmatpush.bf16.msra.mxu0 %v1251
        %1604 = vmatpush.bf16.msra.mxu0 %v1247
        %1605 = vmatpush.bf16.msra.mxu0 %v1243
        %1606 = vmatpush.bf16.msra.mxu0 %v1239
        %1607 = vmatmul.bf16.gmra.mxu0 %v1559
        %v1608 = vpop.f32.mrf.mxu0
        %v1609 = vadd.f32 0.0, %v1608
        %v1610 = vpop.f32.mrf.mxu0
        %1611 = vdwg.mxu0
        %v1612 = vadd.f32 %v1555, %v1570
        %v1613 = vadd.f32 %v1556, %v1583
        %v1614 = vadd.f32 %v1557, %v1596
        %v1615 = vadd.f32 %v1558, %v1609
        %v1616 = vxor.u32 %v1612, 2147483648
        %v1617 = vmul.f32 %v1616, 1.442695
        %v1618 = vpow.pop %v1617
        %v1619 = vadd.f32 %v1618, 1.0
        %v1620 = vrcp.pop %v1619
        %v1621 = vmul.f32 %v1619, %v1620
        %v1622 = vsub.f32 1.0, %v1621
        %v1623 = vmul.f32 %v1620, %v1622
        %v1624 = vadd.f32 %v1620, %v1623
        %vm1625 = vweird.f32 %v1619
        %vm1626 = vweird.f32 %v1620
        %vm1627 = vmor %vm1625, %vm1626
        %v1628 = vsel %vm1627, %v1620, %v1624
        %v1629 = vand.u32 2147483647, %v1619
        %vm1630 = vcmp.eq.f32.partialorder %v1629, 8.507059e+37
        %v1631 = vand.u32 %v1619, 2147483648
        %v1632 = vor.u32 1.1754944e-38, %v1631
        %v1633 = vsel %vm1630, %v1632, %v1628
        %v1634 = vmul.f32 1.0, %v1633
        %v1635 = vxor.u32 %v1613, 2147483648
        %v1636 = vmul.f32 %v1635, 1.442695
        %v1637 = vpow.pop %v1636
        %v1638 = vadd.f32 %v1637, 1.0
        %v1639 = vrcp.pop %v1638
        %v1640 = vmul.f32 %v1638, %v1639
        %v1641 = vsub.f32 1.0, %v1640
        %v1642 = vmul.f32 %v1639, %v1641
        %v1643 = vadd.f32 %v1639, %v1642
        %vm1644 = vweird.f32 %v1638
        %vm1645 = vweird.f32 %v1639
        %vm1646 = vmor %vm1644, %vm1645
        %v1647 = vsel %vm1646, %v1639, %v1643
        %v1648 = vand.u32 2147483647, %v1638
        %vm1649 = vcmp.eq.f32.partialorder %v1648, 8.507059e+37
        %v1650 = vand.u32 %v1638, 2147483648
        %v1651 = vor.u32 1.1754944e-38, %v1650
        %v1652 = vsel %vm1649, %v1651, %v1647
        %v1653 = vmul.f32 1.0, %v1652
        %v1654 = vtanh.pop %v1614
        %v1655 = vxor.u32 %v1615, 2147483648
        %v1656 = vmul.f32 %v1655, 1.442695
        %v1657 = vpow.pop %v1656
        %v1658 = vadd.f32 %v1657, 1.0
        %v1659 = vrcp.pop %v1658
        %v1660 = vmul.f32 %v1658, %v1659
        %v1661 = vsub.f32 1.0, %v1660
        %v1662 = vmul.f32 %v1659, %v1661
        %v1663 = vadd.f32 %v1659, %v1662
        %vm1664 = vweird.f32 %v1658
        %vm1665 = vweird.f32 %v1659
        %vm1666 = vmor %vm1664, %vm1665
        %v1667 = vsel %vm1666, %v1659, %v1663
        %v1668 = vand.u32 2147483647, %v1658
        %vm1669 = vcmp.eq.f32.partialorder %v1668, 8.507059e+37
        %v1670 = vand.u32 %v1658, 2147483648
        %v1671 = vor.u32 1.1754944e-38, %v1670
        %v1672 = vsel %vm1669, %v1671, %v1667
        %v1673 = vmul.f32 1.0, %v1672
        %v1674 = vmul.f32 %v1653, %v1546
        %v1675 = vmul.f32 %v1634, %v1654
        %v1676 = vadd.f32 %v1674, %v1675
        %v1677 = vtanh.pop %v1676
        %v1678 = vmul.f32 %v1673, %v1677
        %s1679 = sadd.s32 %s345, 16
        %s1680 = scalar_lea.vmem [#allocation13], %s1679
        %1681 = vst [vmem:[%s1680] sm:$0xff] %v1678
        %s1682 = smul.u32 3, 4
        %s1683 = smul.addr %s1682, 8
        %s1684 = scalar_lea.vmem [#allocation2], %s1683
        %v1685 = vld [vmem:[%s1684] sm:$0xff]
        %v1686 = vld [vmem:[%s1684 + $0x8] sm:$0xff]
        %v1687 = vld [vmem:[%s1684 + $0x10] sm:$0xff]
        %v1688 = vld [vmem:[%s1684 + $0x18] sm:$0xff]
        %v1689 = vpack.c.bf16 %v1678, %v1678
        %1690 = vmatpush.bf16.msra.mxu0 %v1264
        %1691 = vmatpush.bf16.msra.mxu0 %v1260
        %1692 = vmatpush.bf16.msra.mxu0 %v1256
        %1693 = vmatpush.bf16.msra.mxu0 %v1252
        %1694 = vmatpush.bf16.msra.mxu0 %v1248
        %1695 = vmatpush.bf16.msra.mxu0 %v1244
        %1696 = vmatpush.bf16.msra.mxu0 %v1240
        %1697 = vmatpush.bf16.msra.mxu0 %v1236
        %1698 = vmatmul.bf16.gmra.mxu0 %v1689
        %v1699 = vpop.f32.mrf.mxu0
        %v1700 = vadd.f32 0.0, %v1699
        %v1701 = vpop.f32.mrf.mxu0
        %1702 = vdwg.mxu0
        %1703 = vmatpush.bf16.msra.mxu0 %v1265
        %1704 = vmatpush.bf16.msra.mxu0 %v1261
        %1705 = vmatpush.bf16.msra.mxu0 %v1257
        %1706 = vmatpush.bf16.msra.mxu0 %v1253
        %1707 = vmatpush.bf16.msra.mxu0 %v1249
        %1708 = vmatpush.bf16.msra.mxu0 %v1245
        %1709 = vmatpush.bf16.msra.mxu0 %v1241
        %1710 = vmatpush.bf16.msra.mxu0 %v1237
        %1711 = vmatmul.bf16.gmra.mxu0 %v1689
        %v1712 = vpop.f32.mrf.mxu0
        %v1713 = vadd.f32 0.0, %v1712
        %v1714 = vpop.f32.mrf.mxu0
        %1715 = vdwg.mxu0
        %1716 = vmatpush.bf16.msra.mxu0 %v1266
        %1717 = vmatpush.bf16.msra.mxu0 %v1262
        %1718 = vmatpush.bf16.msra.mxu0 %v1258
        %1719 = vmatpush.bf16.msra.mxu0 %v1254
        %1720 = vmatpush.bf16.msra.mxu0 %v1250
        %1721 = vmatpush.bf16.msra.mxu0 %v1246
        %1722 = vmatpush.bf16.msra.mxu0 %v1242
        %1723 = vmatpush.bf16.msra.mxu0 %v1238
        %1724 = vmatmul.bf16.gmra.mxu0 %v1689
        %v1725 = vpop.f32.mrf.mxu0
        %v1726 = vadd.f32 0.0, %v1725
        %v1727 = vpop.f32.mrf.mxu0
        %1728 = vdwg.mxu0
        %1729 = vmatpush.bf16.msra.mxu0 %v1267
        %1730 = vmatpush.bf16.msra.mxu0 %v1263
        %1731 = vmatpush.bf16.msra.mxu0 %v1259
        %1732 = vmatpush.bf16.msra.mxu0 %v1255
        %1733 = vmatpush.bf16.msra.mxu0 %v1251
        %1734 = vmatpush.bf16.msra.mxu0 %v1247
        %1735 = vmatpush.bf16.msra.mxu0 %v1243
        %1736 = vmatpush.bf16.msra.mxu0 %v1239
        %1737 = vmatmul.bf16.gmra.mxu0 %v1689
        %v1738 = vpop.f32.mrf.mxu0
        %v1739 = vadd.f32 0.0, %v1738
        %v1740 = vpop.f32.mrf.mxu0
        %1741 = vdwg.mxu0
        %v1742 = vadd.f32 %v1685, %v1700
        %v1743 = vadd.f32 %v1686, %v1713
        %v1744 = vadd.f32 %v1687, %v1726
        %v1745 = vadd.f32 %v1688, %v1739
        %v1746 = vxor.u32 %v1742, 2147483648
        %v1747 = vmul.f32 %v1746, 1.442695
        %v1748 = vpow.pop %v1747
        %v1749 = vadd.f32 %v1748, 1.0
        %v1750 = vrcp.pop %v1749
        %v1751 = vmul.f32 %v1749, %v1750
        %v1752 = vsub.f32 1.0, %v1751
        %v1753 = vmul.f32 %v1750, %v1752
        %v1754 = vadd.f32 %v1750, %v1753
        %vm1755 = vweird.f32 %v1749
        %vm1756 = vweird.f32 %v1750
        %vm1757 = vmor %vm1755, %vm1756
        %v1758 = vsel %vm1757, %v1750, %v1754
        %v1759 = vand.u32 2147483647, %v1749
        %vm1760 = vcmp.eq.f32.partialorder %v1759, 8.507059e+37
        %v1761 = vand.u32 %v1749, 2147483648
        %v1762 = vor.u32 1.1754944e-38, %v1761
        %v1763 = vsel %vm1760, %v1762, %v1758
        %v1764 = vmul.f32 1.0, %v1763
        %v1765 = vxor.u32 %v1743, 2147483648
        %v1766 = vmul.f32 %v1765, 1.442695
        %v1767 = vpow.pop %v1766
        %v1768 = vadd.f32 %v1767, 1.0
        %v1769 = vrcp.pop %v1768
        %v1770 = vmul.f32 %v1768, %v1769
        %v1771 = vsub.f32 1.0, %v1770
        %v1772 = vmul.f32 %v1769, %v1771
        %v1773 = vadd.f32 %v1769, %v1772
        %vm1774 = vweird.f32 %v1768
        %vm1775 = vweird.f32 %v1769
        %vm1776 = vmor %vm1774, %vm1775
        %v1777 = vsel %vm1776, %v1769, %v1773
        %v1778 = vand.u32 2147483647, %v1768
        %vm1779 = vcmp.eq.f32.partialorder %v1778, 8.507059e+37
        %v1780 = vand.u32 %v1768, 2147483648
        %v1781 = vor.u32 1.1754944e-38, %v1780
        %v1782 = vsel %vm1779, %v1781, %v1777
        %v1783 = vmul.f32 1.0, %v1782
        %v1784 = vtanh.pop %v1744
        %v1785 = vxor.u32 %v1745, 2147483648
        %v1786 = vmul.f32 %v1785, 1.442695
        %v1787 = vpow.pop %v1786
        %v1788 = vadd.f32 %v1787, 1.0
        %v1789 = vrcp.pop %v1788
        %v1790 = vmul.f32 %v1788, %v1789
        %v1791 = vsub.f32 1.0, %v1790
        %v1792 = vmul.f32 %v1789, %v1791
        %v1793 = vadd.f32 %v1789, %v1792
        %vm1794 = vweird.f32 %v1788
        %vm1795 = vweird.f32 %v1789
        %vm1796 = vmor %vm1794, %vm1795
        %v1797 = vsel %vm1796, %v1789, %v1793
        %v1798 = vand.u32 2147483647, %v1788
        %vm1799 = vcmp.eq.f32.partialorder %v1798, 8.507059e+37
        %v1800 = vand.u32 %v1788, 2147483648
        %v1801 = vor.u32 1.1754944e-38, %v1800
        %v1802 = vsel %vm1799, %v1801, %v1797
        %v1803 = vmul.f32 1.0, %v1802
        %v1804 = vmul.f32 %v1783, %v1676
        %v1805 = vmul.f32 %v1764, %v1784
        %v1806 = vadd.f32 %v1804, %v1805
        %v1807 = vtanh.pop %v1806
        %v1808 = vmul.f32 %v1803, %v1807
        %s1809 = sadd.s32 %s345, 24
        %s1810 = scalar_lea.vmem [#allocation13], %s1809
        %1811 = vst [vmem:[%s1810] sm:$0xff] %v1808
        %s1812 = smul.u32 4, 4
        %s1813 = smul.addr %s1812, 8
        %s1814 = scalar_lea.vmem [#allocation2], %s1813
        %v1815 = vld [vmem:[%s1814] sm:$0xff]
        %v1816 = vld [vmem:[%s1814 + $0x8] sm:$0xff]
        %v1817 = vld [vmem:[%s1814 + $0x10] sm:$0xff]
        %v1818 = vld [vmem:[%s1814 + $0x18] sm:$0xff]
        %v1819 = vpack.c.bf16 %v1808, %v1808
        %1820 = vmatpush.bf16.msra.mxu0 %v1264
        %1821 = vmatpush.bf16.msra.mxu0 %v1260
        %1822 = vmatpush.bf16.msra.mxu0 %v1256
        %1823 = vmatpush.bf16.msra.mxu0 %v1252
        %1824 = vmatpush.bf16.msra.mxu0 %v1248
        %1825 = vmatpush.bf16.msra.mxu0 %v1244
        %1826 = vmatpush.bf16.msra.mxu0 %v1240
        %1827 = vmatpush.bf16.msra.mxu0 %v1236
        %1828 = vmatmul.bf16.gmra.mxu0 %v1819
        %v1829 = vpop.f32.mrf.mxu0
        %v1830 = vadd.f32 0.0, %v1829
        %v1831 = vpop.f32.mrf.mxu0
        %1832 = vdwg.mxu0
        %1833 = vmatpush.bf16.msra.mxu0 %v1265
        %1834 = vmatpush.bf16.msra.mxu0 %v1261
        %1835 = vmatpush.bf16.msra.mxu0 %v1257
        %1836 = vmatpush.bf16.msra.mxu0 %v1253
        %1837 = vmatpush.bf16.msra.mxu0 %v1249
        %1838 = vmatpush.bf16.msra.mxu0 %v1245
        %1839 = vmatpush.bf16.msra.mxu0 %v1241
        %1840 = vmatpush.bf16.msra.mxu0 %v1237
        %1841 = vmatmul.bf16.gmra.mxu0 %v1819
        %v1842 = vpop.f32.mrf.mxu0
        %v1843 = vadd.f32 0.0, %v1842
        %v1844 = vpop.f32.mrf.mxu0
        %1845 = vdwg.mxu0
        %1846 = vmatpush.bf16.msra.mxu0 %v1266
        %1847 = vmatpush.bf16.msra.mxu0 %v1262
        %1848 = vmatpush.bf16.msra.mxu0 %v1258
        %1849 = vmatpush.bf16.msra.mxu0 %v1254
        %1850 = vmatpush.bf16.msra.mxu0 %v1250
        %1851 = vmatpush.bf16.msra.mxu0 %v1246
        %1852 = vmatpush.bf16.msra.mxu0 %v1242
        %1853 = vmatpush.bf16.msra.mxu0 %v1238
        %1854 = vmatmul.bf16.gmra.mxu0 %v1819
        %v1855 = vpop.f32.mrf.mxu0
        %v1856 = vadd.f32 0.0, %v1855
        %v1857 = vpop.f32.mrf.mxu0
        %1858 = vdwg.mxu0
        %1859 = vmatpush.bf16.msra.mxu0 %v1267
        %1860 = vmatpush.bf16.msra.mxu0 %v1263
        %1861 = vmatpush.bf16.msra.mxu0 %v1259
        %1862 = vmatpush.bf16.msra.mxu0 %v1255
        %1863 = vmatpush.bf16.msra.mxu0 %v1251
        %1864 = vmatpush.bf16.msra.mxu0 %v1247
        %1865 = vmatpush.bf16.msra.mxu0 %v1243
        %1866 = vmatpush.bf16.msra.mxu0 %v1239
        %1867 = vmatmul.bf16.gmra.mxu0 %v1819
        %v1868 = vpop.f32.mrf.mxu0
        %v1869 = vadd.f32 0.0, %v1868
        %v1870 = vpop.f32.mrf.mxu0
        %1871 = vdwg.mxu0
        %v1872 = vadd.f32 %v1815, %v1830
        %v1873 = vadd.f32 %v1816, %v1843
        %v1874 = vadd.f32 %v1817, %v1856
        %v1875 = vadd.f32 %v1818, %v1869
        %v1876 = vxor.u32 %v1872, 2147483648
        %v1877 = vmul.f32 %v1876, 1.442695
        %v1878 = vpow.pop %v1877
        %v1879 = vadd.f32 %v1878, 1.0
        %v1880 = vrcp.pop %v1879
        %v1881 = vmul.f32 %v1879, %v1880
        %v1882 = vsub.f32 1.0, %v1881
        %v1883 = vmul.f32 %v1880, %v1882
        %v1884 = vadd.f32 %v1880, %v1883
        %vm1885 = vweird.f32 %v1879
        %vm1886 = vweird.f32 %v1880
        %vm1887 = vmor %vm1885, %vm1886
        %v1888 = vsel %vm1887, %v1880, %v1884
        %v1889 = vand.u32 2147483647, %v1879
        %vm1890 = vcmp.eq.f32.partialorder %v1889, 8.507059e+37
        %v1891 = vand.u32 %v1879, 2147483648
        %v1892 = vor.u32 1.1754944e-38, %v1891
        %v1893 = vsel %vm1890, %v1892, %v1888
        %v1894 = vmul.f32 1.0, %v1893
        %v1895 = vxor.u32 %v1873, 2147483648
        %v1896 = vmul.f32 %v1895, 1.442695
        %v1897 = vpow.pop %v1896
        %v1898 = vadd.f32 %v1897, 1.0
        %v1899 = vrcp.pop %v1898
        %v1900 = vmul.f32 %v1898, %v1899
        %v1901 = vsub.f32 1.0, %v1900
        %v1902 = vmul.f32 %v1899, %v1901
        %v1903 = vadd.f32 %v1899, %v1902
        %vm1904 = vweird.f32 %v1898
        %vm1905 = vweird.f32 %v1899
        %vm1906 = vmor %vm1904, %vm1905
        %v1907 = vsel %vm1906, %v1899, %v1903
        %v1908 = vand.u32 2147483647, %v1898
        %vm1909 = vcmp.eq.f32.partialorder %v1908, 8.507059e+37
        %v1910 = vand.u32 %v1898, 2147483648
        %v1911 = vor.u32 1.1754944e-38, %v1910
        %v1912 = vsel %vm1909, %v1911, %v1907
        %v1913 = vmul.f32 1.0, %v1912
        %v1914 = vtanh.pop %v1874
        %v1915 = vxor.u32 %v1875, 2147483648
        %v1916 = vmul.f32 %v1915, 1.442695
        %v1917 = vpow.pop %v1916
        %v1918 = vadd.f32 %v1917, 1.0
        %v1919 = vrcp.pop %v1918
        %v1920 = vmul.f32 %v1918, %v1919
        %v1921 = vsub.f32 1.0, %v1920
        %v1922 = vmul.f32 %v1919, %v1921
        %v1923 = vadd.f32 %v1919, %v1922
        %vm1924 = vweird.f32 %v1918
        %vm1925 = vweird.f32 %v1919
        %vm1926 = vmor %vm1924, %vm1925
        %v1927 = vsel %vm1926, %v1919, %v1923
        %v1928 = vand.u32 2147483647, %v1918
        %vm1929 = vcmp.eq.f32.partialorder %v1928, 8.507059e+37
        %v1930 = vand.u32 %v1918, 2147483648
        %v1931 = vor.u32 1.1754944e-38, %v1930
        %v1932 = vsel %vm1929, %v1931, %v1927
        %v1933 = vmul.f32 1.0, %v1932
        %v1934 = vmul.f32 %v1913, %v1806
        %v1935 = vmul.f32 %v1894, %v1914
        %v1936 = vadd.f32 %v1934, %v1935
        %v1937 = vtanh.pop %v1936
        %v1938 = vmul.f32 %v1933, %v1937
        %s1939 = sadd.s32 %s345, 32
        %s1940 = scalar_lea.vmem [#allocation13], %s1939
        %1941 = vst [vmem:[%s1940] sm:$0xff] %v1938
        %s1942 = smul.u32 5, 4
        %s1943 = smul.addr %s1942, 8
        %s1944 = scalar_lea.vmem [#allocation2], %s1943
        %v1945 = vld [vmem:[%s1944] sm:$0xff]
        %v1946 = vld [vmem:[%s1944 + $0x8] sm:$0xff]
        %v1947 = vld [vmem:[%s1944 + $0x10] sm:$0xff]
        %v1948 = vld [vmem:[%s1944 + $0x18] sm:$0xff]
        %v1949 = vpack.c.bf16 %v1938, %v1938
        %1950 = vmatpush.bf16.msra.mxu0 %v1264
        %1951 = vmatpush.bf16.msra.mxu0 %v1260
        %1952 = vmatpush.bf16.msra.mxu0 %v1256
        %1953 = vmatpush.bf16.msra.mxu0 %v1252
        %1954 = vmatpush.bf16.msra.mxu0 %v1248
        %1955 = vmatpush.bf16.msra.mxu0 %v1244
        %1956 = vmatpush.bf16.msra.mxu0 %v1240
        %1957 = vmatpush.bf16.msra.mxu0 %v1236
        %1958 = vmatmul.bf16.gmra.mxu0 %v1949
        %v1959 = vpop.f32.mrf.mxu0
        %v1960 = vadd.f32 0.0, %v1959
        %v1961 = vpop.f32.mrf.mxu0
        %1962 = vdwg.mxu0
        %1963 = vmatpush.bf16.msra.mxu0 %v1265
        %1964 = vmatpush.bf16.msra.mxu0 %v1261
        %1965 = vmatpush.bf16.msra.mxu0 %v1257
        %1966 = vmatpush.bf16.msra.mxu0 %v1253
        %1967 = vmatpush.bf16.msra.mxu0 %v1249
        %1968 = vmatpush.bf16.msra.mxu0 %v1245
        %1969 = vmatpush.bf16.msra.mxu0 %v1241
        %1970 = vmatpush.bf16.msra.mxu0 %v1237
        %1971 = vmatmul.bf16.gmra.mxu0 %v1949
        %v1972 = vpop.f32.mrf.mxu0
        %v1973 = vadd.f32 0.0, %v1972
        %v1974 = vpop.f32.mrf.mxu0
        %1975 = vdwg.mxu0
        %1976 = vmatpush.bf16.msra.mxu0 %v1266
        %1977 = vmatpush.bf16.msra.mxu0 %v1262
        %1978 = vmatpush.bf16.msra.mxu0 %v1258
        %1979 = vmatpush.bf16.msra.mxu0 %v1254
        %1980 = vmatpush.bf16.msra.mxu0 %v1250
        %1981 = vmatpush.bf16.msra.mxu0 %v1246
        %1982 = vmatpush.bf16.msra.mxu0 %v1242
        %1983 = vmatpush.bf16.msra.mxu0 %v1238
        %1984 = vmatmul.bf16.gmra.mxu0 %v1949
        %v1985 = vpop.f32.mrf.mxu0
        %v1986 = vadd.f32 0.0, %v1985
        %v1987 = vpop.f32.mrf.mxu0
        %1988 = vdwg.mxu0
        %1989 = vmatpush.bf16.msra.mxu0 %v1267
        %1990 = vmatpush.bf16.msra.mxu0 %v1263
        %1991 = vmatpush.bf16.msra.mxu0 %v1259
        %1992 = vmatpush.bf16.msra.mxu0 %v1255
        %1993 = vmatpush.bf16.msra.mxu0 %v1251
        %1994 = vmatpush.bf16.msra.mxu0 %v1247
        %1995 = vmatpush.bf16.msra.mxu0 %v1243
        %1996 = vmatpush.bf16.msra.mxu0 %v1239
        %1997 = vmatmul.bf16.gmra.mxu0 %v1949
        %v1998 = vpop.f32.mrf.mxu0
        %v1999 = vadd.f32 0.0, %v1998
        %v2000 = vpop.f32.mrf.mxu0
        %2001 = vdwg.mxu0
        %v2002 = vadd.f32 %v1945, %v1960
        %v2003 = vadd.f32 %v1946, %v1973
        %v2004 = vadd.f32 %v1947, %v1986
        %v2005 = vadd.f32 %v1948, %v1999
        %v2006 = vxor.u32 %v2002, 2147483648
        %v2007 = vmul.f32 %v2006, 1.442695
        %v2008 = vpow.pop %v2007
        %v2009 = vadd.f32 %v2008, 1.0
        %v2010 = vrcp.pop %v2009
        %v2011 = vmul.f32 %v2009, %v2010
        %v2012 = vsub.f32 1.0, %v2011
        %v2013 = vmul.f32 %v2010, %v2012
        %v2014 = vadd.f32 %v2010, %v2013
        %vm2015 = vweird.f32 %v2009
        %vm2016 = vweird.f32 %v2010
        %vm2017 = vmor %vm2015, %vm2016
        %v2018 = vsel %vm2017, %v2010, %v2014
        %v2019 = vand.u32 2147483647, %v2009
        %vm2020 = vcmp.eq.f32.partialorder %v2019, 8.507059e+37
        %v2021 = vand.u32 %v2009, 2147483648
        %v2022 = vor.u32 1.1754944e-38, %v2021
        %v2023 = vsel %vm2020, %v2022, %v2018
        %v2024 = vmul.f32 1.0, %v2023
        %v2025 = vxor.u32 %v2003, 2147483648
        %v2026 = vmul.f32 %v2025, 1.442695
        %v2027 = vpow.pop %v2026
        %v2028 = vadd.f32 %v2027, 1.0
        %v2029 = vrcp.pop %v2028
        %v2030 = vmul.f32 %v2028, %v2029
        %v2031 = vsub.f32 1.0, %v2030
        %v2032 = vmul.f32 %v2029, %v2031
        %v2033 = vadd.f32 %v2029, %v2032
        %vm2034 = vweird.f32 %v2028
        %vm2035 = vweird.f32 %v2029
        %vm2036 = vmor %vm2034, %vm2035
        %v2037 = vsel %vm2036, %v2029, %v2033
        %v2038 = vand.u32 2147483647, %v2028
        %vm2039 = vcmp.eq.f32.partialorder %v2038, 8.507059e+37
        %v2040 = vand.u32 %v2028, 2147483648
        %v2041 = vor.u32 1.1754944e-38, %v2040
        %v2042 = vsel %vm2039, %v2041, %v2037
        %v2043 = vmul.f32 1.0, %v2042
        %v2044 = vtanh.pop %v2004
        %v2045 = vxor.u32 %v2005, 2147483648
        %v2046 = vmul.f32 %v2045, 1.442695
        %v2047 = vpow.pop %v2046
        %v2048 = vadd.f32 %v2047, 1.0
        %v2049 = vrcp.pop %v2048
        %v2050 = vmul.f32 %v2048, %v2049
        %v2051 = vsub.f32 1.0, %v2050
        %v2052 = vmul.f32 %v2049, %v2051
        %v2053 = vadd.f32 %v2049, %v2052
        %vm2054 = vweird.f32 %v2048
        %vm2055 = vweird.f32 %v2049
        %vm2056 = vmor %vm2054, %vm2055
        %v2057 = vsel %vm2056, %v2049, %v2053
        %v2058 = vand.u32 2147483647, %v2048
        %vm2059 = vcmp.eq.f32.partialorder %v2058, 8.507059e+37
        %v2060 = vand.u32 %v2048, 2147483648
        %v2061 = vor.u32 1.1754944e-38, %v2060
        %v2062 = vsel %vm2059, %v2061, %v2057
        %v2063 = vmul.f32 1.0, %v2062
        %v2064 = vmul.f32 %v2043, %v1936
        %v2065 = vmul.f32 %v2024, %v2044
        %v2066 = vadd.f32 %v2064, %v2065
        %v2067 = vtanh.pop %v2066
        %v2068 = vmul.f32 %v2063, %v2067
        %s2069 = sadd.s32 %s345, 40
        %s2070 = scalar_lea.vmem [#allocation13], %s2069
        %2071 = vst [vmem:[%s2070] sm:$0xff] %v2068
        %s2072 = smul.u32 6, 4
        %s2073 = smul.addr %s2072, 8
        %s2074 = scalar_lea.vmem [#allocation2], %s2073
        %v2075 = vld [vmem:[%s2074] sm:$0xff]
        %v2076 = vld [vmem:[%s2074 + $0x8] sm:$0xff]
        %v2077 = vld [vmem:[%s2074 + $0x10] sm:$0xff]
        %v2078 = vld [vmem:[%s2074 + $0x18] sm:$0xff]
        %v2079 = vpack.c.bf16 %v2068, %v2068
        %2080 = vmatpush.bf16.msra.mxu0 %v1264
        %2081 = vmatpush.bf16.msra.mxu0 %v1260
        %2082 = vmatpush.bf16.msra.mxu0 %v1256
        %2083 = vmatpush.bf16.msra.mxu0 %v1252
        %2084 = vmatpush.bf16.msra.mxu0 %v1248
        %2085 = vmatpush.bf16.msra.mxu0 %v1244
        %2086 = vmatpush.bf16.msra.mxu0 %v1240
        %2087 = vmatpush.bf16.msra.mxu0 %v1236
        %2088 = vmatmul.bf16.gmra.mxu0 %v2079
        %v2089 = vpop.f32.mrf.mxu0
        %v2090 = vadd.f32 0.0, %v2089
        %v2091 = vpop.f32.mrf.mxu0
        %2092 = vdwg.mxu0
        %2093 = vmatpush.bf16.msra.mxu0 %v1265
        %2094 = vmatpush.bf16.msra.mxu0 %v1261
        %2095 = vmatpush.bf16.msra.mxu0 %v1257
        %2096 = vmatpush.bf16.msra.mxu0 %v1253
        %2097 = vmatpush.bf16.msra.mxu0 %v1249
        %2098 = vmatpush.bf16.msra.mxu0 %v1245
        %2099 = vmatpush.bf16.msra.mxu0 %v1241
        %2100 = vmatpush.bf16.msra.mxu0 %v1237
        %2101 = vmatmul.bf16.gmra.mxu0 %v2079
        %v2102 = vpop.f32.mrf.mxu0
        %v2103 = vadd.f32 0.0, %v2102
        %v2104 = vpop.f32.mrf.mxu0
        %2105 = vdwg.mxu0
        %2106 = vmatpush.bf16.msra.mxu0 %v1266
        %2107 = vmatpush.bf16.msra.mxu0 %v1262
        %2108 = vmatpush.bf16.msra.mxu0 %v1258
        %2109 = vmatpush.bf16.msra.mxu0 %v1254
        %2110 = vmatpush.bf16.msra.mxu0 %v1250
        %2111 = vmatpush.bf16.msra.mxu0 %v1246
        %2112 = vmatpush.bf16.msra.mxu0 %v1242
        %2113 = vmatpush.bf16.msra.mxu0 %v1238
        %2114 = vmatmul.bf16.gmra.mxu0 %v2079
        %v2115 = vpop.f32.mrf.mxu0
        %v2116 = vadd.f32 0.0, %v2115
        %v2117 = vpop.f32.mrf.mxu0
        %2118 = vdwg.mxu0
        %2119 = vmatpush.bf16.msra.mxu0 %v1267
        %2120 = vmatpush.bf16.msra.mxu0 %v1263
        %2121 = vmatpush.bf16.msra.mxu0 %v1259
        %2122 = vmatpush.bf16.msra.mxu0 %v1255
        %2123 = vmatpush.bf16.msra.mxu0 %v1251
        %2124 = vmatpush.bf16.msra.mxu0 %v1247
        %2125 = vmatpush.bf16.msra.mxu0 %v1243
        %2126 = vmatpush.bf16.msra.mxu0 %v1239
        %2127 = vmatmul.bf16.gmra.mxu0 %v2079
        %v2128 = vpop.f32.mrf.mxu0
        %v2129 = vadd.f32 0.0, %v2128
        %v2130 = vpop.f32.mrf.mxu0
        %2131 = vdwg.mxu0
        %v2132 = vadd.f32 %v2075, %v2090
        %v2133 = vadd.f32 %v2076, %v2103
        %v2134 = vadd.f32 %v2077, %v2116
        %v2135 = vadd.f32 %v2078, %v2129
        %v2136 = vxor.u32 %v2132, 2147483648
        %v2137 = vmul.f32 %v2136, 1.442695
        %v2138 = vpow.pop %v2137
        %v2139 = vadd.f32 %v2138, 1.0
        %v2140 = vrcp.pop %v2139
        %v2141 = vmul.f32 %v2139, %v2140
        %v2142 = vsub.f32 1.0, %v2141
        %v2143 = vmul.f32 %v2140, %v2142
        %v2144 = vadd.f32 %v2140, %v2143
        %vm2145 = vweird.f32 %v2139
        %vm2146 = vweird.f32 %v2140
        %vm2147 = vmor %vm2145, %vm2146
        %v2148 = vsel %vm2147, %v2140, %v2144
        %v2149 = vand.u32 2147483647, %v2139
        %vm2150 = vcmp.eq.f32.partialorder %v2149, 8.507059e+37
        %v2151 = vand.u32 %v2139, 2147483648
        %v2152 = vor.u32 1.1754944e-38, %v2151
        %v2153 = vsel %vm2150, %v2152, %v2148
        %v2154 = vmul.f32 1.0, %v2153
        %v2155 = vxor.u32 %v2133, 2147483648
        %v2156 = vmul.f32 %v2155, 1.442695
        %v2157 = vpow.pop %v2156
        %v2158 = vadd.f32 %v2157, 1.0
        %v2159 = vrcp.pop %v2158
        %v2160 = vmul.f32 %v2158, %v2159
        %v2161 = vsub.f32 1.0, %v2160
        %v2162 = vmul.f32 %v2159, %v2161
        %v2163 = vadd.f32 %v2159, %v2162
        %vm2164 = vweird.f32 %v2158
        %vm2165 = vweird.f32 %v2159
        %vm2166 = vmor %vm2164, %vm2165
        %v2167 = vsel %vm2166, %v2159, %v2163
        %v2168 = vand.u32 2147483647, %v2158
        %vm2169 = vcmp.eq.f32.partialorder %v2168, 8.507059e+37
        %v2170 = vand.u32 %v2158, 2147483648
        %v2171 = vor.u32 1.1754944e-38, %v2170
        %v2172 = vsel %vm2169, %v2171, %v2167
        %v2173 = vmul.f32 1.0, %v2172
        %v2174 = vtanh.pop %v2134
        %v2175 = vxor.u32 %v2135, 2147483648
        %v2176 = vmul.f32 %v2175, 1.442695
        %v2177 = vpow.pop %v2176
        %v2178 = vadd.f32 %v2177, 1.0
        %v2179 = vrcp.pop %v2178
        %v2180 = vmul.f32 %v2178, %v2179
        %v2181 = vsub.f32 1.0, %v2180
        %v2182 = vmul.f32 %v2179, %v2181
        %v2183 = vadd.f32 %v2179, %v2182
        %vm2184 = vweird.f32 %v2178
        %vm2185 = vweird.f32 %v2179
        %vm2186 = vmor %vm2184, %vm2185
        %v2187 = vsel %vm2186, %v2179, %v2183
        %v2188 = vand.u32 2147483647, %v2178
        %vm2189 = vcmp.eq.f32.partialorder %v2188, 8.507059e+37
        %v2190 = vand.u32 %v2178, 2147483648
        %v2191 = vor.u32 1.1754944e-38, %v2190
        %v2192 = vsel %vm2189, %v2191, %v2187
        %v2193 = vmul.f32 1.0, %v2192
        %v2194 = vmul.f32 %v2173, %v2066
        %v2195 = vmul.f32 %v2154, %v2174
        %v2196 = vadd.f32 %v2194, %v2195
        %v2197 = vtanh.pop %v2196
        %v2198 = vmul.f32 %v2193, %v2197
        %s2199 = sadd.s32 %s345, 48
        %s2200 = scalar_lea.vmem [#allocation13], %s2199
        %2201 = vst [vmem:[%s2200] sm:$0xff] %v2198
        %s2202 = smul.u32 7, 4
        %s2203 = smul.addr %s2202, 8
        %s2204 = scalar_lea.vmem [#allocation2], %s2203
        %v2205 = vld [vmem:[%s2204] sm:$0xff]
        %v2206 = vld [vmem:[%s2204 + $0x8] sm:$0xff]
        %v2207 = vld [vmem:[%s2204 + $0x10] sm:$0xff]
        %v2208 = vld [vmem:[%s2204 + $0x18] sm:$0xff]
        %v2209 = vpack.c.bf16 %v2198, %v2198
        %2210 = vmatpush.bf16.msra.mxu0 %v1264
        %2211 = vmatpush.bf16.msra.mxu0 %v1260
        %2212 = vmatpush.bf16.msra.mxu0 %v1256
        %2213 = vmatpush.bf16.msra.mxu0 %v1252
        %2214 = vmatpush.bf16.msra.mxu0 %v1248
        %2215 = vmatpush.bf16.msra.mxu0 %v1244
        %2216 = vmatpush.bf16.msra.mxu0 %v1240
        %2217 = vmatpush.bf16.msra.mxu0 %v1236
        %2218 = vmatmul.bf16.gmra.mxu0 %v2209
        %v2219 = vpop.f32.mrf.mxu0
        %v2220 = vadd.f32 0.0, %v2219
        %v2221 = vpop.f32.mrf.mxu0
        %2222 = vdwg.mxu0
        %2223 = vmatpush.bf16.msra.mxu0 %v1265
        %2224 = vmatpush.bf16.msra.mxu0 %v1261
        %2225 = vmatpush.bf16.msra.mxu0 %v1257
        %2226 = vmatpush.bf16.msra.mxu0 %v1253
        %2227 = vmatpush.bf16.msra.mxu0 %v1249
        %2228 = vmatpush.bf16.msra.mxu0 %v1245
        %2229 = vmatpush.bf16.msra.mxu0 %v1241
        %2230 = vmatpush.bf16.msra.mxu0 %v1237
        %2231 = vmatmul.bf16.gmra.mxu0 %v2209
        %v2232 = vpop.f32.mrf.mxu0
        %v2233 = vadd.f32 0.0, %v2232
        %v2234 = vpop.f32.mrf.mxu0
        %2235 = vdwg.mxu0
        %2236 = vmatpush.bf16.msra.mxu0 %v1266
        %2237 = vmatpush.bf16.msra.mxu0 %v1262
        %2238 = vmatpush.bf16.msra.mxu0 %v1258
        %2239 = vmatpush.bf16.msra.mxu0 %v1254
        %2240 = vmatpush.bf16.msra.mxu0 %v1250
        %2241 = vmatpush.bf16.msra.mxu0 %v1246
        %2242 = vmatpush.bf16.msra.mxu0 %v1242
        %2243 = vmatpush.bf16.msra.mxu0 %v1238
        %2244 = vmatmul.bf16.gmra.mxu0 %v2209
        %v2245 = vpop.f32.mrf.mxu0
        %v2246 = vadd.f32 0.0, %v2245
        %v2247 = vpop.f32.mrf.mxu0
        %2248 = vdwg.mxu0
        %2249 = vmatpush.bf16.msra.mxu0 %v1267
        %2250 = vmatpush.bf16.msra.mxu0 %v1263
        %2251 = vmatpush.bf16.msra.mxu0 %v1259
        %2252 = vmatpush.bf16.msra.mxu0 %v1255
        %2253 = vmatpush.bf16.msra.mxu0 %v1251
        %2254 = vmatpush.bf16.msra.mxu0 %v1247
        %2255 = vmatpush.bf16.msra.mxu0 %v1243
        %2256 = vmatpush.bf16.msra.mxu0 %v1239
        %2257 = vmatmul.bf16.gmra.mxu0 %v2209
        %v2258 = vpop.f32.mrf.mxu0
        %v2259 = vadd.f32 0.0, %v2258
        %v2260 = vpop.f32.mrf.mxu0
        %2261 = vdwg.mxu0
        %v2262 = vadd.f32 %v2205, %v2220
        %v2263 = vadd.f32 %v2206, %v2233
        %v2264 = vadd.f32 %v2207, %v2246
        %v2265 = vadd.f32 %v2208, %v2259
        %v2266 = vxor.u32 %v2262, 2147483648
        %v2267 = vmul.f32 %v2266, 1.442695
        %v2268 = vpow.pop %v2267
        %v2269 = vadd.f32 %v2268, 1.0
        %v2270 = vrcp.pop %v2269
        %v2271 = vmul.f32 %v2269, %v2270
        %v2272 = vsub.f32 1.0, %v2271
        %v2273 = vmul.f32 %v2270, %v2272
        %v2274 = vadd.f32 %v2270, %v2273
        %vm2275 = vweird.f32 %v2269
        %vm2276 = vweird.f32 %v2270
        %vm2277 = vmor %vm2275, %vm2276
        %v2278 = vsel %vm2277, %v2270, %v2274
        %v2279 = vand.u32 2147483647, %v2269
        %vm2280 = vcmp.eq.f32.partialorder %v2279, 8.507059e+37
        %v2281 = vand.u32 %v2269, 2147483648
        %v2282 = vor.u32 1.1754944e-38, %v2281
        %v2283 = vsel %vm2280, %v2282, %v2278
        %v2284 = vmul.f32 1.0, %v2283
        %v2285 = vxor.u32 %v2263, 2147483648
        %v2286 = vmul.f32 %v2285, 1.442695
        %v2287 = vpow.pop %v2286
        %v2288 = vadd.f32 %v2287, 1.0
        %v2289 = vrcp.pop %v2288
        %v2290 = vmul.f32 %v2288, %v2289
        %v2291 = vsub.f32 1.0, %v2290
        %v2292 = vmul.f32 %v2289, %v2291
        %v2293 = vadd.f32 %v2289, %v2292
        %vm2294 = vweird.f32 %v2288
        %vm2295 = vweird.f32 %v2289
        %vm2296 = vmor %vm2294, %vm2295
        %v2297 = vsel %vm2296, %v2289, %v2293
        %v2298 = vand.u32 2147483647, %v2288
        %vm2299 = vcmp.eq.f32.partialorder %v2298, 8.507059e+37
        %v2300 = vand.u32 %v2288, 2147483648
        %v2301 = vor.u32 1.1754944e-38, %v2300
        %v2302 = vsel %vm2299, %v2301, %v2297
        %v2303 = vmul.f32 1.0, %v2302
        %v2304 = vtanh.pop %v2264
        %v2305 = vxor.u32 %v2265, 2147483648
        %v2306 = vmul.f32 %v2305, 1.442695
        %v2307 = vpow.pop %v2306
        %v2308 = vadd.f32 %v2307, 1.0
        %v2309 = vrcp.pop %v2308
        %v2310 = vmul.f32 %v2308, %v2309
        %v2311 = vsub.f32 1.0, %v2310
        %v2312 = vmul.f32 %v2309, %v2311
        %v2313 = vadd.f32 %v2309, %v2312
        %vm2314 = vweird.f32 %v2308
        %vm2315 = vweird.f32 %v2309
        %vm2316 = vmor %vm2314, %vm2315
        %v2317 = vsel %vm2316, %v2309, %v2313
        %v2318 = vand.u32 2147483647, %v2308
        %vm2319 = vcmp.eq.f32.partialorder %v2318, 8.507059e+37
        %v2320 = vand.u32 %v2308, 2147483648
        %v2321 = vor.u32 1.1754944e-38, %v2320
        %v2322 = vsel %vm2319, %v2321, %v2317
        %v2323 = vmul.f32 1.0, %v2322
        %v2324 = vmul.f32 %v2303, %v2196
        %v2325 = vmul.f32 %v2284, %v2304
        %v2326 = vadd.f32 %v2324, %v2325
        %v2327 = vtanh.pop %v2326
        %v2328 = vmul.f32 %v2323, %v2327
        %s2329 = sadd.s32 %s345, 56
        %s2330 = scalar_lea.vmem [#allocation13], %s2329
        %2331 = vst [vmem:[%s2330] sm:$0xff] %v2328
        %2332 = vst [vmem:[#allocation3] sm:$0xff] %v2328
        %2333 = vst [vmem:[#allocation4] sm:$0xff] %v2326
        // Predicated region
        $region65: #{tpu_custom_call.1} parent=35 // pred_check
          %p2334 = pneg %p166
        $region66: #{tpu_custom_call.1} parent=35 // pred_check_branch
          %2336 = sbr.rel (%p2334) target = $region68
        $region67: #{tpu_custom_call.1} parent=35 // pred_region
          %s2337 = smul.u32 8, %s28
          %2339 = vsyncadd [#allocation7], 0
          %s2340 = smul.addr %s2337, 8
          %s2341 = scalar_lea.hbm %s4, %s2340
          %s2342 = sshll.u32 [#allocation13], 4
          %s2343 = int_to_ptr.vmem [resolvable:$true] %s2342
          %s2344 = sshll.u32 %s2341, 4
          %s2345 = int_to_ptr.hbm [resolvable:$true] %s2344
          %2350 = dma.vmem_to_hbm [thread:$0]  %s2343, 1024, %s2345, [#allocation7], 128, 128, 8
        $region68: #{tpu_custom_call.1} parent=35 // pred_fallthru
          _
        // Predicated region
        $region69: #{tpu_custom_call.1} parent=35 // pred_check
          %p2351 = pneg %p166
        $region70: #{tpu_custom_call.1} parent=35 // pred_check_branch
          %2353 = sbr.rel (%p2351) target = $region72
        $region71: #{tpu_custom_call.1} parent=35 // pred_region
          %2355 = dma.done [#allocation7], 1024
        $region72: #{tpu_custom_call.1} parent=35 // pred_fallthru
          _
      $region36: #{tpu_custom_call.1} parent=5 // pred_fallthru
        _
      %p2356 = scmp.le.s32.totalorder 2, %s18
      // Predicated region
      $region73: #{tpu_custom_call.1} parent=5 // pred_check
        %p2357 = pneg %p2356
      $region74: #{tpu_custom_call.1} parent=5 // pred_check_branch
        %2359 = sbr.rel (%p2357) target = $region76
      $region75: #{tpu_custom_call.1} parent=5 // pred_region
        %s2360 = ssub.s32 %s18, 2
      $region76: #{tpu_custom_call.1} parent=5 // pred_fallthru
        _
    $region6: #{tpu_custom_call.1} parent=1 // loop_footer
      %s22 = sadd.s32 1, %s18
    $region7: #{tpu_custom_call.1} parent=1 // loop_footer_branch
      %17 = sbr.rel target = $region3
    $region8: #{tpu_custom_call.1} parent=1 // loop_exit
      _
    %2361 = vsyncpa [#allocation6], 1
    %s2362 = scalar_lea.sflag [#allocation6], 1
    %2363 = vsyncpa %s2362, 1
    %2364 = vsyncpa [#allocation9], 1
    %s2365 = scalar_lea.sflag [#allocation9], 1
    %2366 = vsyncpa %s2365, 1
    %2367 = vsyncpa [#allocation12], 1
    %s2368 = scalar_lea.sflag [#allocation12], 1
    %2369 = vsyncpa %s2368, 1
    %2370 = vsyncpa [#allocation7], 1
    %s2371 = scalar_lea.sflag [#allocation7], 1
    %2372 = vsyncpa %s2371, 1

</llo_original>
